<compile_context>
chip_gen: v7x
topology: tpu7x:2x2x1
jax: 0.10.0
libtpu: 0.0.40
codegen_flags: <defaults>
</compile_context>

<pallas_src>
import functools

import jax
import jax.numpy as jnp
from jax.experimental import pallas as pl
from jax.experimental.pallas import tpu as pltpu


def _blstm_kernel(x_ref, h0_ref, c0_ref,
                  wih_ref, b_ref, whh_f_ref, whh_b_ref,
                  wout_ref, bout_ref,
                  out_ref,
                  xg_ref, hseq_ref, *, T, B, H):
    """Fused bidirectional LSTM + output projection, all blocks VMEM-resident.

    x_ref     : (T*B, D_in)   time-major sequence, flattened to rows
    h0/c0_ref : (2, B, H)     [0] = forward dir, [1] = backward dir
    wih_ref   : (D_in, 8H)    [fwd i|f|g|o  |  bwd i|f|g|o], i/f/o cols pre-scaled by 0.5
    b_ref     : (1, 8H)       combined b_ih + b_hh, same layout / scaling
    whh_*_ref : (H, 4H)       recurrent weights per direction, same scaling
    wout_ref  : (2H, 128)     hidden2out, zero-padded to 128 lanes
    bout_ref  : (1, 128)      zero-padded bias
    out_ref   : (T*B, 128)    lane-dense padded output (sliced outside)
    xg_ref    : (T*B, 8H)     VMEM scratch: precomputed input-side gate pre-activations
    hseq_ref  : (T*B, 2H)     VMEM scratch: [h_fwd | h_bwd] per timestep
    """
    G4 = 4 * H

    # ---- Phase 1: hoisted input-side gate matmul (one big MXU op), biases folded.
    xg_ref[...] = (jnp.dot(x_ref[...], wih_ref[...],
                           preferred_element_type=jnp.float32)
                   + b_ref[...])

    # ---- Phase 2: merged fwd/bwd recurrence; only h @ Whh sits on the chain.
    whh_f = whh_f_ref[...]          # critical-path operands: hoist these two only
    whh_b = whh_b_ref[...]

    h_f, c_f = h0_ref[0], c0_ref[0]
    h_b, c_b = h0_ref[1], c0_ref[1]

    def cell(xg_t, h, c, whh):
        # g columns: [i | f | g | o]; i/f/o columns arrive pre-scaled by 0.5.
        g = jnp.dot(h, whh, preferred_element_type=jnp.float32) + xg_t
        t = jnp.tanh(g)                      # one full-width (B, 4H=128) EUP op
        s = 0.5 * t + 0.5                    # sigmoid via tanh identity (full width)
        i = s[:, 0 * H:1 * H]
        f = s[:, 1 * H:2 * H]
        gg = t[:, 2 * H:3 * H]
        o = s[:, 3 * H:4 * H]
        c_new = f * c + i * gg
        h_new = o * jnp.tanh(c_new)
        return h_new, c_new

    for sf in range(T):                      # statically unrolled (T is small)
        sb = T - 1 - sf
        # Two independent chains advanced per iteration -> latencies overlap.
        h_f, c_f = cell(xg_ref[pl.ds(sf * B, B), :G4], h_f, c_f, whh_f)
        h_b, c_b = cell(xg_ref[pl.ds(sb * B, B), G4:], h_b, c_b, whh_b)
        hseq_ref[pl.ds(sf * B, B), :H] = h_f
        hseq_ref[pl.ds(sb * B, B), H:] = h_b

    # ---- Phase 3: deferred hidden2out projection; one lane-dense MXU op and
    #      one unmasked slab store.
    out_ref[...] = (jnp.dot(hseq_ref[...], wout_ref[...],
                            preferred_element_type=jnp.float32)
                    + bout_ref[...]).astype(out_ref.dtype)


def blstm_forward(params, x, h0, c0):
    """Matches MyBLSTM.forward(sequence, h, c): (T, B, D_in) -> (T, B, D_out)."""
    T, B, D_in = x.shape
    H = params["whh_f"].shape[0]
    G4 = 4 * H
    D_out = params["w_out"].shape[1]
    DP = 128  # lane-dense padded output width

    f32 = jnp.float32

    # 0.5 pre-scale on i/f/o gate columns (sigmoid(z) = 0.5*tanh(0.5*z) + 0.5);
    # g-gate columns keep scale 1.0.  Folding the scale into the weights keeps
    # the in-kernel math to a single tanh per direction per step.
    scale = jnp.concatenate([jnp.full((2 * H,), 0.5, f32),
                             jnp.ones((H,), f32),
                             jnp.full((H,), 0.5, f32)])

    wih_packed = jnp.concatenate([params["wih_f"] * scale,
                                  params["wih_b"] * scale], axis=1)   # (D_in, 8H)
    b_packed = jnp.concatenate([params["b_f"] * scale,
                                params["b_b"] * scale], axis=1)       # (1, 8H)
    whh_f_s = params["whh_f"] * scale                                  # (H, 4H)
    whh_b_s = params["whh_b"] * scale                                  # (H, 4H)

    # hidden2out zero-padded to 128 lanes so the final store is an unmasked vst.
    wout_pad = jnp.zeros((2 * H, DP), f32).at[:, :D_out].set(params["w_out"])
    bout_pad = jnp.zeros((1, DP), f32).at[:, :D_out].set(params["b_out"])

    x2d = x.reshape(T * B, D_in)

    kernel = functools.partial(_blstm_kernel, T=T, B=B, H=H)

    out2d = pl.pallas_call(
        kernel,
        out_shape=jax.ShapeDtypeStruct((T * B, DP), f32),
        in_specs=[
            pl.BlockSpec((T * B, D_in), lambda: (0, 0)),
            pl.BlockSpec((2, B, H), lambda: (0, 0, 0)),
            pl.BlockSpec((2, B, H), lambda: (0, 0, 0)),
            pl.BlockSpec((D_in, 2 * G4), lambda: (0, 0)),
            pl.BlockSpec((1, 2 * G4), lambda: (0, 0)),
            pl.BlockSpec((H, G4), lambda: (0, 0)),
            pl.BlockSpec((H, G4), lambda: (0, 0)),
            pl.BlockSpec((2 * H, DP), lambda: (0, 0)),
            pl.BlockSpec((1, DP), lambda: (0, 0)),
        ],
        out_specs=pl.BlockSpec((T * B, DP), lambda: (0, 0)),
        scratch_shapes=[
            pltpu.VMEM((T * B, 2 * G4), f32),   # precomputed input-side gates
            pltpu.VMEM((T * B, 2 * H), f32),    # [h_fwd | h_bwd] per timestep
        ],
    )(x2d, h0, c0, wih_packed, b_packed, whh_f_s, whh_b_s, wout_pad, bout_pad)

    return out2d.reshape(T, B, DP)[..., :D_out]


def init_blstm_params(key, d_in, h, d_out, dtype=jnp.float32):
    """Mimics nn.LSTM / nn.Linear init: U(-1/sqrt(fan), 1/sqrt(fan)).

    Weights stored pre-transposed ([in, out]); gate order is PyTorch's
    [i, f, g, o]; LSTM biases b_ih + b_hh pre-summed.
    """
    def u(k, shape, bound):
        return jax.random.uniform(k, shape, dtype, -bound, bound)

    keys = jax.random.split(key, 10)
    kl = 1.0 / jnp.sqrt(h)          # nn.LSTM bound
    ko = 1.0 / jnp.sqrt(2 * h)      # nn.Linear bound (fan_in = 2H)
    return {
        "wih_f": u(keys[0], (d_in, 4 * h), kl),
        "whh_f": u(keys[1], (h, 4 * h), kl),
        "b_f": u(keys[2], (1, 4 * h), kl) + u(keys[3], (1, 4 * h), kl),
        "wih_b": u(keys[4], (d_in, 4 * h), kl),
        "whh_b": u(keys[5], (h, 4 * h), kl),
        "b_b": u(keys[6], (1, 4 * h), kl) + u(keys[7], (1, 4 * h), kl),
        "w_out": u(keys[8], (2 * h, d_out), ko),
        "b_out": u(keys[9], (d_out,), ko),
    }


def blstm_reference(params, x, h0, c0):
    """Pure-JAX reference (same math as PyTorch bidirectional LSTM + Linear)."""
    T, B, _ = x.shape
    H = params["whh_f"].shape[0]

    def sigmoid(z):
        return 1.0 / (1.0 + jnp.exp(-z))

    def cell(x_t, h, c, wih, whh, b):
        g = x_t @ wih + h @ whh + b
        i = sigmoid(g[:, 0 * H:1 * H])
        f = sigmoid(g[:, 1 * H:2 * H])
        gg = jnp.tanh(g[:, 2 * H:3 * H])
        o = sigmoid(g[:, 3 * H:4 * H])
        c = f * c + i * gg
        h = o * jnp.tanh(c)
        return h, c

    hf = []
    h, c = h0[0], c0[0]
    for t in range(T):
        h, c = cell(x[t], h, c, params["wih_f"], params["whh_f"], params["b_f"])
        hf.append(h)

    hb = [None] * T
    h, c = h0[1], c0[1]
    for s in range(T):
        t = T - 1 - s
        h, c = cell(x[t], h, c, params["wih_b"], params["whh_b"], params["b_b"])
        hb[t] = h

    out = jnp.concatenate([jnp.stack(hf), jnp.stack(hb)], axis=-1)  # (T, B, 2H)
    return out @ params["w_out"] + params["b_out"]


if __name__ == "__main__":
    # Small shapes consistent with MyBLSTM: seq T=8, batch B=8, D_in=32, H=32,
    # D_out=16, num_layers=1, bidirectional=True.
    D_in, H, D_out = 32, 32, 16
    T, B = 8, 8

    key = jax.random.PRNGKey(0)
    key, kx, kh, kc = jax.random.split(key, 4)
    x = jax.random.normal(kx, (T, B, D_in), jnp.float32)
    # MyBLSTM.init_hidden gives zeros; use small random (h, c) to fully
    # exercise the initial-state path (forward() accepts arbitrary states).
    h0 = 0.1 * jax.random.normal(kh, (2, B, H), jnp.float32)
    c0 = 0.1 * jax.random.normal(kc, (2, B, H), jnp.float32)

    params = init_blstm_params(key, D_in, H, D_out)

    out = blstm_forward(params, x, h0, c0)
    out = jax.block_until_ready(out)

    ref = blstm_reference(params, x, h0, c0)
    assert out.shape == (T, B, D_out), out.shape
    max_err = float(jnp.max(jnp.abs(out - ref)))
    assert jnp.allclose(out, ref, atol=1e-4, rtol=1e-4), f"mismatch: {max_err}"

    print("KERNEL_OK")
</pallas_src>

<mosaic_0001>
module attributes {stable_mosaic.version = 11 : i64} {
  func.func @_blstm_kernel(%arg0: memref<64x32xf32, #tpu.memory_space<vmem>>, %arg1: memref<2x8x32xf32, #tpu.memory_space<vmem>>, %arg2: memref<2x8x32xf32, #tpu.memory_space<vmem>>, %arg3: memref<32x256xf32, #tpu.memory_space<vmem>>, %arg4: memref<1x256xf32, #tpu.memory_space<vmem>>, %arg5: memref<32x128xf32, #tpu.memory_space<vmem>>, %arg6: memref<32x128xf32, #tpu.memory_space<vmem>>, %arg7: memref<64x128xf32, #tpu.memory_space<vmem>>, %arg8: memref<1x128xf32, #tpu.memory_space<vmem>>, %arg9: memref<64x128xf32, #tpu.memory_space<vmem>>, %arg10: memref<64x256xf32, #tpu.memory_space<vmem>>, %arg11: memref<64x64xf32, #tpu.memory_space<vmem>>) attributes {dimension_semantics = [], scalar_prefetch = 0 : i64, scratch_operands = 2 : i64, tpu.core_type = #tpu.core_type<tc>} {
    %c0 = arith.constant 0 : index
    %c0_0 = arith.constant 0 : index
    %0 = vector.load %arg0[%c0, %c0_0] : memref<64x32xf32, #tpu.memory_space<vmem>>, vector<64x32xf32>
    %c0_1 = arith.constant 0 : index
    %c0_2 = arith.constant 0 : index
    %1 = vector.load %arg3[%c0_1, %c0_2] : memref<32x256xf32, #tpu.memory_space<vmem>>, vector<32x256xf32>
    %cst = arith.constant dense<0.000000e+00> : vector<64x256xf32>
    %2 = tpu.matmul %0, %1, %cst {dimension_numbers = #tpu.dot_dimension_numbers<[1], [0], [0], [1], [0, 0, 1, 1], [], []>} : vector<64x32xf32>, vector<32x256xf32>, vector<64x256xf32> -> vector<64x256xf32>
    %c0_3 = arith.constant 0 : index
    %c0_4 = arith.constant 0 : index
    %3 = vector.load %arg4[%c0_3, %c0_4] : memref<1x256xf32, #tpu.memory_space<vmem>>, vector<1x256xf32>
    %4 = vector.broadcast %3 : vector<1x256xf32> to vector<64x256xf32>
    %5 = arith.addf %2, %4 : vector<64x256xf32>
    %c0_5 = arith.constant 0 : index
    %c0_6 = arith.constant 0 : index
    %6 = vector.load %arg10[%c0_5, %c0_6] : memref<64x256xf32, #tpu.memory_space<vmem>>, vector<64x256xf32>
    tpu.vector_store %arg10[%c0_5, %c0_6], %5 {strides = array<i32>} : memref<64x256xf32, #tpu.memory_space<vmem>>, vector<64x256xf32>,
    %c0_7 = arith.constant 0 : index
    %c0_8 = arith.constant 0 : index
    %7 = vector.load %arg5[%c0_7, %c0_8] : memref<32x128xf32, #tpu.memory_space<vmem>>, vector<32x128xf32>
    %c0_9 = arith.constant 0 : index
    %c0_10 = arith.constant 0 : index
    %8 = vector.load %arg6[%c0_9, %c0_10] : memref<32x128xf32, #tpu.memory_space<vmem>>, vector<32x128xf32>
    %c0_11 = arith.constant 0 : index
    %c0_12 = arith.constant 0 : index
    %c0_13 = arith.constant 0 : index
    %9 = vector.load %arg1[%c0_11, %c0_12, %c0_13] : memref<2x8x32xf32, #tpu.memory_space<vmem>>, vector<1x8x32xf32>
    %10 = vector.shape_cast %9 : vector<1x8x32xf32> to vector<8x32xf32>
    %c0_14 = arith.constant 0 : index
    %c0_15 = arith.constant 0 : index
    %c0_16 = arith.constant 0 : index
    %11 = vector.load %arg2[%c0_14, %c0_15, %c0_16] : memref<2x8x32xf32, #tpu.memory_space<vmem>>, vector<1x8x32xf32>
    %12 = vector.shape_cast %11 : vector<1x8x32xf32> to vector<8x32xf32>
    %c1 = arith.constant 1 : index
    %c0_17 = arith.constant 0 : index
    %c0_18 = arith.constant 0 : index
    %13 = vector.load %arg1[%c1, %c0_17, %c0_18] : memref<2x8x32xf32, #tpu.memory_space<vmem>>, vector<1x8x32xf32>
    %14 = vector.shape_cast %13 : vector<1x8x32xf32> to vector<8x32xf32>
    %c1_19 = arith.constant 1 : index
    %c0_20 = arith.constant 0 : index
    %c0_21 = arith.constant 0 : index
    %15 = vector.load %arg2[%c1_19, %c0_20, %c0_21] : memref<2x8x32xf32, #tpu.memory_space<vmem>>, vector<1x8x32xf32>
    %16 = vector.shape_cast %15 : vector<1x8x32xf32> to vector<8x32xf32>
    %c0_22 = arith.constant 0 : index
    %c0_23 = arith.constant 0 : index
    %17 = vector.load %arg10[%c0_22, %c0_23] : memref<64x256xf32, #tpu.memory_space<vmem>>, vector<8x128xf32>
    %cst_24 = arith.constant dense<0.000000e+00> : vector<8x128xf32>
    %18 = tpu.matmul %10, %7, %cst_24 {dimension_numbers = #tpu.dot_dimension_numbers<[1], [0], [0], [1], [0, 0, 1, 1], [], []>} : vector<8x32xf32>, vector<32x128xf32>, vector<8x128xf32> -> vector<8x128xf32>
    %19 = arith.addf %18, %17 : vector<8x128xf32>
    %20 = math.tanh %19 : vector<8x128xf32>
    %cst_25 = arith.constant 5.000000e-01 : f32
    %21 = vector.broadcast %cst_25 : f32 to vector<8x128xf32>
    %22 = arith.mulf %21, %20 : vector<8x128xf32>
    %cst_26 = arith.constant 5.000000e-01 : f32
    %23 = vector.broadcast %cst_26 : f32 to vector<8x128xf32>
    %24 = arith.addf %22, %23 : vector<8x128xf32>
    %25 = vector.extract_strided_slice %24 {offsets = [0, 0], sizes = [8, 32], strides = [1, 1]} : vector<8x128xf32> to vector<8x32xf32>
    %26 = vector.extract_strided_slice %24 {offsets = [0, 32], sizes = [8, 32], strides = [1, 1]} : vector<8x128xf32> to vector<8x32xf32>
    %27 = vector.extract_strided_slice %20 {offsets = [0, 64], sizes = [8, 32], strides = [1, 1]} : vector<8x128xf32> to vector<8x32xf32>
    %28 = vector.extract_strided_slice %24 {offsets = [0, 96], sizes = [8, 32], strides = [1, 1]} : vector<8x128xf32> to vector<8x32xf32>
    %29 = arith.mulf %26, %12 : vector<8x32xf32>
    %30 = arith.mulf %25, %27 : vector<8x32xf32>
    %31 = arith.addf %29, %30 : vector<8x32xf32>
    %32 = math.tanh %31 : vector<8x32xf32>
    %33 = arith.mulf %28, %32 : vector<8x32xf32>
    %c56 = arith.constant 56 : index
    %c128 = arith.constant 128 : index
    %34 = vector.load %arg10[%c56, %c128] : memref<64x256xf32, #tpu.memory_space<vmem>>, vector<8x128xf32>
    %cst_27 = arith.constant dense<0.000000e+00> : vector<8x128xf32>
    %35 = tpu.matmul %14, %8, %cst_27 {dimension_numbers = #tpu.dot_dimension_numbers<[1], [0], [0], [1], [0, 0, 1, 1], [], []>} : vector<8x32xf32>, vector<32x128xf32>, vector<8x128xf32> -> vector<8x128xf32>
    %36 = arith.addf %35, %34 : vector<8x128xf32>
    %37 = math.tanh %36 : vector<8x128xf32>
    %cst_28 = arith.constant 5.000000e-01 : f32
    %38 = vector.broadcast %cst_28 : f32 to vector<8x128xf32>
    %39 = arith.mulf %38, %37 : vector<8x128xf32>
    %cst_29 = arith.constant 5.000000e-01 : f32
    %40 = vector.broadcast %cst_29 : f32 to vector<8x128xf32>
    %41 = arith.addf %39, %40 : vector<8x128xf32>
    %42 = vector.extract_strided_slice %41 {offsets = [0, 0], sizes = [8, 32], strides = [1, 1]} : vector<8x128xf32> to vector<8x32xf32>
    %43 = vector.extract_strided_slice %41 {offsets = [0, 32], sizes = [8, 32], strides = [1, 1]} : vector<8x128xf32> to vector<8x32xf32>
    %44 = vector.extract_strided_slice %37 {offsets = [0, 64], sizes = [8, 32], strides = [1, 1]} : vector<8x128xf32> to vector<8x32xf32>
    %45 = vector.extract_strided_slice %41 {offsets = [0, 96], sizes = [8, 32], strides = [1, 1]} : vector<8x128xf32> to vector<8x32xf32>
    %46 = arith.mulf %43, %16 : vector<8x32xf32>
    %47 = arith.mulf %42, %44 : vector<8x32xf32>
    %48 = arith.addf %46, %47 : vector<8x32xf32>
    %49 = math.tanh %48 : vector<8x32xf32>
    %50 = arith.mulf %45, %49 : vector<8x32xf32>
    %c0_30 = arith.constant 0 : index
    %c0_31 = arith.constant 0 : index
    %51 = vector.load %arg11[%c0_30, %c0_31] : memref<64x64xf32, #tpu.memory_space<vmem>>, vector<8x32xf32>
    tpu.vector_store %arg11[%c0_30, %c0_31], %33 {strides = array<i32>} : memref<64x64xf32, #tpu.memory_space<vmem>>, vector<8x32xf32>,
    %c56_32 = arith.constant 56 : index
    %c32 = arith.constant 32 : index
    %52 = vector.load %arg11[%c56_32, %c32] : memref<64x64xf32, #tpu.memory_space<vmem>>, vector<8x32xf32>
    tpu.vector_store %arg11[%c56_32, %c32], %50 {strides = array<i32>} : memref<64x64xf32, #tpu.memory_space<vmem>>, vector<8x32xf32>,
    %c8 = arith.constant 8 : index
    %c0_33 = arith.constant 0 : index
    %53 = vector.load %arg10[%c8, %c0_33] : memref<64x256xf32, #tpu.memory_space<vmem>>, vector<8x128xf32>
    %cst_34 = arith.constant dense<0.000000e+00> : vector<8x128xf32>
    %54 = tpu.matmul %33, %7, %cst_34 {dimension_numbers = #tpu.dot_dimension_numbers<[1], [0], [0], [1], [0, 0, 1, 1], [], []>} : vector<8x32xf32>, vector<32x128xf32>, vector<8x128xf32> -> vector<8x128xf32>
    %55 = arith.addf %54, %53 : vector<8x128xf32>
    %56 = math.tanh %55 : vector<8x128xf32>
    %cst_35 = arith.constant 5.000000e-01 : f32
    %57 = vector.broadcast %cst_35 : f32 to vector<8x128xf32>
    %58 = arith.mulf %57, %56 : vector<8x128xf32>
    %cst_36 = arith.constant 5.000000e-01 : f32
    %59 = vector.broadcast %cst_36 : f32 to vector<8x128xf32>
    %60 = arith.addf %58, %59 : vector<8x128xf32>
    %61 = vector.extract_strided_slice %60 {offsets = [0, 0], sizes = [8, 32], strides = [1, 1]} : vector<8x128xf32> to vector<8x32xf32>
    %62 = vector.extract_strided_slice %60 {offsets = [0, 32], sizes = [8, 32], strides = [1, 1]} : vector<8x128xf32> to vector<8x32xf32>
    %63 = vector.extract_strided_slice %56 {offsets = [0, 64], sizes = [8, 32], strides = [1, 1]} : vector<8x128xf32> to vector<8x32xf32>
    %64 = vector.extract_strided_slice %60 {offsets = [0, 96], sizes = [8, 32], strides = [1, 1]} : vector<8x128xf32> to vector<8x32xf32>
    %65 = arith.mulf %62, %31 : vector<8x32xf32>
    %66 = arith.mulf %61, %63 : vector<8x32xf32>
    %67 = arith.addf %65, %66 : vector<8x32xf32>
    %68 = math.tanh %67 : vector<8x32xf32>
    %69 = arith.mulf %64, %68 : vector<8x32xf32>
    %c48 = arith.constant 48 : index
    %c128_37 = arith.constant 128 : index
    %70 = vector.load %arg10[%c48, %c128_37] : memref<64x256xf32, #tpu.memory_space<vmem>>, vector<8x128xf32>
    %cst_38 = arith.constant dense<0.000000e+00> : vector<8x128xf32>
    %71 = tpu.matmul %50, %8, %cst_38 {dimension_numbers = #tpu.dot_dimension_numbers<[1], [0], [0], [1], [0, 0, 1, 1], [], []>} : vector<8x32xf32>, vector<32x128xf32>, vector<8x128xf32> -> vector<8x128xf32>
    %72 = arith.addf %71, %70 : vector<8x128xf32>
    %73 = math.tanh %72 : vector<8x128xf32>
    %cst_39 = arith.constant 5.000000e-01 : f32
    %74 = vector.broadcast %cst_39 : f32 to vector<8x128xf32>
    %75 = arith.mulf %74, %73 : vector<8x128xf32>
    %cst_40 = arith.constant 5.000000e-01 : f32
    %76 = vector.broadcast %cst_40 : f32 to vector<8x128xf32>
    %77 = arith.addf %75, %76 : vector<8x128xf32>
    %78 = vector.extract_strided_slice %77 {offsets = [0, 0], sizes = [8, 32], strides = [1, 1]} : vector<8x128xf32> to vector<8x32xf32>
    %79 = vector.extract_strided_slice %77 {offsets = [0, 32], sizes = [8, 32], strides = [1, 1]} : vector<8x128xf32> to vector<8x32xf32>
    %80 = vector.extract_strided_slice %73 {offsets = [0, 64], sizes = [8, 32], strides = [1, 1]} : vector<8x128xf32> to vector<8x32xf32>
    %81 = vector.extract_strided_slice %77 {offsets = [0, 96], sizes = [8, 32], strides = [1, 1]} : vector<8x128xf32> to vector<8x32xf32>
    %82 = arith.mulf %79, %48 : vector<8x32xf32>
    %83 = arith.mulf %78, %80 : vector<8x32xf32>
    %84 = arith.addf %82, %83 : vector<8x32xf32>
    %85 = math.tanh %84 : vector<8x32xf32>
    %86 = arith.mulf %81, %85 : vector<8x32xf32>
    %c8_41 = arith.constant 8 : index
    %c0_42 = arith.constant 0 : index
    %87 = vector.load %arg11[%c8_41, %c0_42] : memref<64x64xf32, #tpu.memory_space<vmem>>, vector<8x32xf32>
    tpu.vector_store %arg11[%c8_41, %c0_42], %69 {strides = array<i32>} : memref<64x64xf32, #tpu.memory_space<vmem>>, vector<8x32xf32>,
    %c48_43 = arith.constant 48 : index
    %c32_44 = arith.constant 32 : index
    %88 = vector.load %arg11[%c48_43, %c32_44] : memref<64x64xf32, #tpu.memory_space<vmem>>, vector<8x32xf32>
    tpu.vector_store %arg11[%c48_43, %c32_44], %86 {strides = array<i32>} : memref<64x64xf32, #tpu.memory_space<vmem>>, vector<8x32xf32>,
    %c16 = arith.constant 16 : index
    %c0_45 = arith.constant 0 : index
    %89 = vector.load %arg10[%c16, %c0_45] : memref<64x256xf32, #tpu.memory_space<vmem>>, vector<8x128xf32>
    %cst_46 = arith.constant dense<0.000000e+00> : vector<8x128xf32>
    %90 = tpu.matmul %69, %7, %cst_46 {dimension_numbers = #tpu.dot_dimension_numbers<[1], [0], [0], [1], [0, 0, 1, 1], [], []>} : vector<8x32xf32>, vector<32x128xf32>, vector<8x128xf32> -> vector<8x128xf32>
    %91 = arith.addf %90, %89 : vector<8x128xf32>
    %92 = math.tanh %91 : vector<8x128xf32>
    %cst_47 = arith.constant 5.000000e-01 : f32
    %93 = vector.broadcast %cst_47 : f32 to vector<8x128xf32>
    %94 = arith.mulf %93, %92 : vector<8x128xf32>
    %cst_48 = arith.constant 5.000000e-01 : f32
    %95 = vector.broadcast %cst_48 : f32 to vector<8x128xf32>
    %96 = arith.addf %94, %95 : vector<8x128xf32>
    %97 = vector.extract_strided_slice %96 {offsets = [0, 0], sizes = [8, 32], strides = [1, 1]} : vector<8x128xf32> to vector<8x32xf32>
    %98 = vector.extract_strided_slice %96 {offsets = [0, 32], sizes = [8, 32], strides = [1, 1]} : vector<8x128xf32> to vector<8x32xf32>
    %99 = vector.extract_strided_slice %92 {offsets = [0, 64], sizes = [8, 32], strides = [1, 1]} : vector<8x128xf32> to vector<8x32xf32>
    %100 = vector.extract_strided_slice %96 {offsets = [0, 96], sizes = [8, 32], strides = [1, 1]} : vector<8x128xf32> to vector<8x32xf32>
    %101 = arith.mulf %98, %67 : vector<8x32xf32>
    %102 = arith.mulf %97, %99 : vector<8x32xf32>
    %103 = arith.addf %101, %102 : vector<8x32xf32>
    %104 = math.tanh %103 : vector<8x32xf32>
    %105 = arith.mulf %100, %104 : vector<8x32xf32>
    %c40 = arith.constant 40 : index
    %c128_49 = arith.constant 128 : index
    %106 = vector.load %arg10[%c40, %c128_49] : memref<64x256xf32, #tpu.memory_space<vmem>>, vector<8x128xf32>
    %cst_50 = arith.constant dense<0.000000e+00> : vector<8x128xf32>
    %107 = tpu.matmul %86, %8, %cst_50 {dimension_numbers = #tpu.dot_dimension_numbers<[1], [0], [0], [1], [0, 0, 1, 1], [], []>} : vector<8x32xf32>, vector<32x128xf32>, vector<8x128xf32> -> vector<8x128xf32>
    %108 = arith.addf %107, %106 : vector<8x128xf32>
    %109 = math.tanh %108 : vector<8x128xf32>
    %cst_51 = arith.constant 5.000000e-01 : f32
    %110 = vector.broadcast %cst_51 : f32 to vector<8x128xf32>
    %111 = arith.mulf %110, %109 : vector<8x128xf32>
    %cst_52 = arith.constant 5.000000e-01 : f32
    %112 = vector.broadcast %cst_52 : f32 to vector<8x128xf32>
    %113 = arith.addf %111, %112 : vector<8x128xf32>
    %114 = vector.extract_strided_slice %113 {offsets = [0, 0], sizes = [8, 32], strides = [1, 1]} : vector<8x128xf32> to vector<8x32xf32>
    %115 = vector.extract_strided_slice %113 {offsets = [0, 32], sizes = [8, 32], strides = [1, 1]} : vector<8x128xf32> to vector<8x32xf32>
    %116 = vector.extract_strided_slice %109 {offsets = [0, 64], sizes = [8, 32], strides = [1, 1]} : vector<8x128xf32> to vector<8x32xf32>
    %117 = vector.extract_strided_slice %113 {offsets = [0, 96], sizes = [8, 32], strides = [1, 1]} : vector<8x128xf32> to vector<8x32xf32>
    %118 = arith.mulf %115, %84 : vector<8x32xf32>
    %119 = arith.mulf %114, %116 : vector<8x32xf32>
    %120 = arith.addf %118, %119 : vector<8x32xf32>
    %121 = math.tanh %120 : vector<8x32xf32>
    %122 = arith.mulf %117, %121 : vector<8x32xf32>
    %c16_53 = arith.constant 16 : index
    %c0_54 = arith.constant 0 : index
    %123 = vector.load %arg11[%c16_53, %c0_54] : memref<64x64xf32, #tpu.memory_space<vmem>>, vector<8x32xf32>
    tpu.vector_store %arg11[%c16_53, %c0_54], %105 {strides = array<i32>} : memref<64x64xf32, #tpu.memory_space<vmem>>, vector<8x32xf32>,
    %c40_55 = arith.constant 40 : index
    %c32_56 = arith.constant 32 : index
    %124 = vector.load %arg11[%c40_55, %c32_56] : memref<64x64xf32, #tpu.memory_space<vmem>>, vector<8x32xf32>
    tpu.vector_store %arg11[%c40_55, %c32_56], %122 {strides = array<i32>} : memref<64x64xf32, #tpu.memory_space<vmem>>, vector<8x32xf32>,
    %c24 = arith.constant 24 : index
    %c0_57 = arith.constant 0 : index
    %125 = vector.load %arg10[%c24, %c0_57] : memref<64x256xf32, #tpu.memory_space<vmem>>, vector<8x128xf32>
    %cst_58 = arith.constant dense<0.000000e+00> : vector<8x128xf32>
    %126 = tpu.matmul %105, %7, %cst_58 {dimension_numbers = #tpu.dot_dimension_numbers<[1], [0], [0], [1], [0, 0, 1, 1], [], []>} : vector<8x32xf32>, vector<32x128xf32>, vector<8x128xf32> -> vector<8x128xf32>
    %127 = arith.addf %126, %125 : vector<8x128xf32>
    %128 = math.tanh %127 : vector<8x128xf32>
    %cst_59 = arith.constant 5.000000e-01 : f32
    %129 = vector.broadcast %cst_59 : f32 to vector<8x128xf32>
    %130 = arith.mulf %129, %128 : vector<8x128xf32>
    %cst_60 = arith.constant 5.000000e-01 : f32
    %131 = vector.broadcast %cst_60 : f32 to vector<8x128xf32>
    %132 = arith.addf %130, %131 : vector<8x128xf32>
    %133 = vector.extract_strided_slice %132 {offsets = [0, 0], sizes = [8, 32], strides = [1, 1]} : vector<8x128xf32> to vector<8x32xf32>
    %134 = vector.extract_strided_slice %132 {offsets = [0, 32], sizes = [8, 32], strides = [1, 1]} : vector<8x128xf32> to vector<8x32xf32>
    %135 = vector.extract_strided_slice %128 {offsets = [0, 64], sizes = [8, 32], strides = [1, 1]} : vector<8x128xf32> to vector<8x32xf32>
    %136 = vector.extract_strided_slice %132 {offsets = [0, 96], sizes = [8, 32], strides = [1, 1]} : vector<8x128xf32> to vector<8x32xf32>
    %137 = arith.mulf %134, %103 : vector<8x32xf32>
    %138 = arith.mulf %133, %135 : vector<8x32xf32>
    %139 = arith.addf %137, %138 : vector<8x32xf32>
    %140 = math.tanh %139 : vector<8x32xf32>
    %141 = arith.mulf %136, %140 : vector<8x32xf32>
    %c32_61 = arith.constant 32 : index
    %c128_62 = arith.constant 128 : index
    %142 = vector.load %arg10[%c32_61, %c128_62] : memref<64x256xf32, #tpu.memory_space<vmem>>, vector<8x128xf32>
    %cst_63 = arith.constant dense<0.000000e+00> : vector<8x128xf32>
    %143 = tpu.matmul %122, %8, %cst_63 {dimension_numbers = #tpu.dot_dimension_numbers<[1], [0], [0], [1], [0, 0, 1, 1], [], []>} : vector<8x32xf32>, vector<32x128xf32>, vector<8x128xf32> -> vector<8x128xf32>
    %144 = arith.addf %143, %142 : vector<8x128xf32>
    %145 = math.tanh %144 : vector<8x128xf32>
    %cst_64 = arith.constant 5.000000e-01 : f32
    %146 = vector.broadcast %cst_64 : f32 to vector<8x128xf32>
    %147 = arith.mulf %146, %145 : vector<8x128xf32>
    %cst_65 = arith.constant 5.000000e-01 : f32
    %148 = vector.broadcast %cst_65 : f32 to vector<8x128xf32>
    %149 = arith.addf %147, %148 : vector<8x128xf32>
    %150 = vector.extract_strided_slice %149 {offsets = [0, 0], sizes = [8, 32], strides = [1, 1]} : vector<8x128xf32> to vector<8x32xf32>
    %151 = vector.extract_strided_slice %149 {offsets = [0, 32], sizes = [8, 32], strides = [1, 1]} : vector<8x128xf32> to vector<8x32xf32>
    %152 = vector.extract_strided_slice %145 {offsets = [0, 64], sizes = [8, 32], strides = [1, 1]} : vector<8x128xf32> to vector<8x32xf32>
    %153 = vector.extract_strided_slice %149 {offsets = [0, 96], sizes = [8, 32], strides = [1, 1]} : vector<8x128xf32> to vector<8x32xf32>
    %154 = arith.mulf %151, %120 : vector<8x32xf32>
    %155 = arith.mulf %150, %152 : vector<8x32xf32>
    %156 = arith.addf %154, %155 : vector<8x32xf32>
    %157 = math.tanh %156 : vector<8x32xf32>
    %158 = arith.mulf %153, %157 : vector<8x32xf32>
    %c24_66 = arith.constant 24 : index
    %c0_67 = arith.constant 0 : index
    %159 = vector.load %arg11[%c24_66, %c0_67] : memref<64x64xf32, #tpu.memory_space<vmem>>, vector<8x32xf32>
    tpu.vector_store %arg11[%c24_66, %c0_67], %141 {strides = array<i32>} : memref<64x64xf32, #tpu.memory_space<vmem>>, vector<8x32xf32>,
    %c32_68 = arith.constant 32 : index
    %c32_69 = arith.constant 32 : index
    %160 = vector.load %arg11[%c32_68, %c32_69] : memref<64x64xf32, #tpu.memory_space<vmem>>, vector<8x32xf32>
    tpu.vector_store %arg11[%c32_68, %c32_69], %158 {strides = array<i32>} : memref<64x64xf32, #tpu.memory_space<vmem>>, vector<8x32xf32>,
    %c32_70 = arith.constant 32 : index
    %c0_71 = arith.constant 0 : index
    %161 = vector.load %arg10[%c32_70, %c0_71] : memref<64x256xf32, #tpu.memory_space<vmem>>, vector<8x128xf32>
    %cst_72 = arith.constant dense<0.000000e+00> : vector<8x128xf32>
    %162 = tpu.matmul %141, %7, %cst_72 {dimension_numbers = #tpu.dot_dimension_numbers<[1], [0], [0], [1], [0, 0, 1, 1], [], []>} : vector<8x32xf32>, vector<32x128xf32>, vector<8x128xf32> -> vector<8x128xf32>
    %163 = arith.addf %162, %161 : vector<8x128xf32>
    %164 = math.tanh %163 : vector<8x128xf32>
    %cst_73 = arith.constant 5.000000e-01 : f32
    %165 = vector.broadcast %cst_73 : f32 to vector<8x128xf32>
    %166 = arith.mulf %165, %164 : vector<8x128xf32>
    %cst_74 = arith.constant 5.000000e-01 : f32
    %167 = vector.broadcast %cst_74 : f32 to vector<8x128xf32>
    %168 = arith.addf %166, %167 : vector<8x128xf32>
    %169 = vector.extract_strided_slice %168 {offsets = [0, 0], sizes = [8, 32], strides = [1, 1]} : vector<8x128xf32> to vector<8x32xf32>
    %170 = vector.extract_strided_slice %168 {offsets = [0, 32], sizes = [8, 32], strides = [1, 1]} : vector<8x128xf32> to vector<8x32xf32>
    %171 = vector.extract_strided_slice %164 {offsets = [0, 64], sizes = [8, 32], strides = [1, 1]} : vector<8x128xf32> to vector<8x32xf32>
    %172 = vector.extract_strided_slice %168 {offsets = [0, 96], sizes = [8, 32], strides = [1, 1]} : vector<8x128xf32> to vector<8x32xf32>
    %173 = arith.mulf %170, %139 : vector<8x32xf32>
    %174 = arith.mulf %169, %171 : vector<8x32xf32>
    %175 = arith.addf %173, %174 : vector<8x32xf32>
    %176 = math.tanh %175 : vector<8x32xf32>
    %177 = arith.mulf %172, %176 : vector<8x32xf32>
    %c24_75 = arith.constant 24 : index
    %c128_76 = arith.constant 128 : index
    %178 = vector.load %arg10[%c24_75, %c128_76] : memref<64x256xf32, #tpu.memory_space<vmem>>, vector<8x128xf32>
    %cst_77 = arith.constant dense<0.000000e+00> : vector<8x128xf32>
    %179 = tpu.matmul %158, %8, %cst_77 {dimension_numbers = #tpu.dot_dimension_numbers<[1], [0], [0], [1], [0, 0, 1, 1], [], []>} : vector<8x32xf32>, vector<32x128xf32>, vector<8x128xf32> -> vector<8x128xf32>
    %180 = arith.addf %179, %178 : vector<8x128xf32>
    %181 = math.tanh %180 : vector<8x128xf32>
    %cst_78 = arith.constant 5.000000e-01 : f32
    %182 = vector.broadcast %cst_78 : f32 to vector<8x128xf32>
    %183 = arith.mulf %182, %181 : vector<8x128xf32>
    %cst_79 = arith.constant 5.000000e-01 : f32
    %184 = vector.broadcast %cst_79 : f32 to vector<8x128xf32>
    %185 = arith.addf %183, %184 : vector<8x128xf32>
    %186 = vector.extract_strided_slice %185 {offsets = [0, 0], sizes = [8, 32], strides = [1, 1]} : vector<8x128xf32> to vector<8x32xf32>
    %187 = vector.extract_strided_slice %185 {offsets = [0, 32], sizes = [8, 32], strides = [1, 1]} : vector<8x128xf32> to vector<8x32xf32>
    %188 = vector.extract_strided_slice %181 {offsets = [0, 64], sizes = [8, 32], strides = [1, 1]} : vector<8x128xf32> to vector<8x32xf32>
    %189 = vector.extract_strided_slice %185 {offsets = [0, 96], sizes = [8, 32], strides = [1, 1]} : vector<8x128xf32> to vector<8x32xf32>
    %190 = arith.mulf %187, %156 : vector<8x32xf32>
    %191 = arith.mulf %186, %188 : vector<8x32xf32>
    %192 = arith.addf %190, %191 : vector<8x32xf32>
    %193 = math.tanh %192 : vector<8x32xf32>
    %194 = arith.mulf %189, %193 : vector<8x32xf32>
    %c32_80 = arith.constant 32 : index
    %c0_81 = arith.constant 0 : index
    %195 = vector.load %arg11[%c32_80, %c0_81] : memref<64x64xf32, #tpu.memory_space<vmem>>, vector<8x32xf32>
    tpu.vector_store %arg11[%c32_80, %c0_81], %177 {strides = array<i32>} : memref<64x64xf32, #tpu.memory_space<vmem>>, vector<8x32xf32>,
    %c24_82 = arith.constant 24 : index
    %c32_83 = arith.constant 32 : index
    %196 = vector.load %arg11[%c24_82, %c32_83] : memref<64x64xf32, #tpu.memory_space<vmem>>, vector<8x32xf32>
    tpu.vector_store %arg11[%c24_82, %c32_83], %194 {strides = array<i32>} : memref<64x64xf32, #tpu.memory_space<vmem>>, vector<8x32xf32>,
    %c40_84 = arith.constant 40 : index
    %c0_85 = arith.constant 0 : index
    %197 = vector.load %arg10[%c40_84, %c0_85] : memref<64x256xf32, #tpu.memory_space<vmem>>, vector<8x128xf32>
    %cst_86 = arith.constant dense<0.000000e+00> : vector<8x128xf32>
    %198 = tpu.matmul %177, %7, %cst_86 {dimension_numbers = #tpu.dot_dimension_numbers<[1], [0], [0], [1], [0, 0, 1, 1], [], []>} : vector<8x32xf32>, vector<32x128xf32>, vector<8x128xf32> -> vector<8x128xf32>
    %199 = arith.addf %198, %197 : vector<8x128xf32>
    %200 = math.tanh %199 : vector<8x128xf32>
    %cst_87 = arith.constant 5.000000e-01 : f32
    %201 = vector.broadcast %cst_87 : f32 to vector<8x128xf32>
    %202 = arith.mulf %201, %200 : vector<8x128xf32>
    %cst_88 = arith.constant 5.000000e-01 : f32
    %203 = vector.broadcast %cst_88 : f32 to vector<8x128xf32>
    %204 = arith.addf %202, %203 : vector<8x128xf32>
    %205 = vector.extract_strided_slice %204 {offsets = [0, 0], sizes = [8, 32], strides = [1, 1]} : vector<8x128xf32> to vector<8x32xf32>
    %206 = vector.extract_strided_slice %204 {offsets = [0, 32], sizes = [8, 32], strides = [1, 1]} : vector<8x128xf32> to vector<8x32xf32>
    %207 = vector.extract_strided_slice %200 {offsets = [0, 64], sizes = [8, 32], strides = [1, 1]} : vector<8x128xf32> to vector<8x32xf32>
    %208 = vector.extract_strided_slice %204 {offsets = [0, 96], sizes = [8, 32], strides = [1, 1]} : vector<8x128xf32> to vector<8x32xf32>
    %209 = arith.mulf %206, %175 : vector<8x32xf32>
    %210 = arith.mulf %205, %207 : vector<8x32xf32>
    %211 = arith.addf %209, %210 : vector<8x32xf32>
    %212 = math.tanh %211 : vector<8x32xf32>
    %213 = arith.mulf %208, %212 : vector<8x32xf32>
    %c16_89 = arith.constant 16 : index
    %c128_90 = arith.constant 128 : index
    %214 = vector.load %arg10[%c16_89, %c128_90] : memref<64x256xf32, #tpu.memory_space<vmem>>, vector<8x128xf32>
    %cst_91 = arith.constant dense<0.000000e+00> : vector<8x128xf32>
    %215 = tpu.matmul %194, %8, %cst_91 {dimension_numbers = #tpu.dot_dimension_numbers<[1], [0], [0], [1], [0, 0, 1, 1], [], []>} : vector<8x32xf32>, vector<32x128xf32>, vector<8x128xf32> -> vector<8x128xf32>
    %216 = arith.addf %215, %214 : vector<8x128xf32>
    %217 = math.tanh %216 : vector<8x128xf32>
    %cst_92 = arith.constant 5.000000e-01 : f32
    %218 = vector.broadcast %cst_92 : f32 to vector<8x128xf32>
    %219 = arith.mulf %218, %217 : vector<8x128xf32>
    %cst_93 = arith.constant 5.000000e-01 : f32
    %220 = vector.broadcast %cst_93 : f32 to vector<8x128xf32>
    %221 = arith.addf %219, %220 : vector<8x128xf32>
    %222 = vector.extract_strided_slice %221 {offsets = [0, 0], sizes = [8, 32], strides = [1, 1]} : vector<8x128xf32> to vector<8x32xf32>
    %223 = vector.extract_strided_slice %221 {offsets = [0, 32], sizes = [8, 32], strides = [1, 1]} : vector<8x128xf32> to vector<8x32xf32>
    %224 = vector.extract_strided_slice %217 {offsets = [0, 64], sizes = [8, 32], strides = [1, 1]} : vector<8x128xf32> to vector<8x32xf32>
    %225 = vector.extract_strided_slice %221 {offsets = [0, 96], sizes = [8, 32], strides = [1, 1]} : vector<8x128xf32> to vector<8x32xf32>
    %226 = arith.mulf %223, %192 : vector<8x32xf32>
    %227 = arith.mulf %222, %224 : vector<8x32xf32>
    %228 = arith.addf %226, %227 : vector<8x32xf32>
    %229 = math.tanh %228 : vector<8x32xf32>
    %230 = arith.mulf %225, %229 : vector<8x32xf32>
    %c40_94 = arith.constant 40 : index
    %c0_95 = arith.constant 0 : index
    %231 = vector.load %arg11[%c40_94, %c0_95] : memref<64x64xf32, #tpu.memory_space<vmem>>, vector<8x32xf32>
    tpu.vector_store %arg11[%c40_94, %c0_95], %213 {strides = array<i32>} : memref<64x64xf32, #tpu.memory_space<vmem>>, vector<8x32xf32>,
    %c16_96 = arith.constant 16 : index
    %c32_97 = arith.constant 32 : index
    %232 = vector.load %arg11[%c16_96, %c32_97] : memref<64x64xf32, #tpu.memory_space<vmem>>, vector<8x32xf32>
    tpu.vector_store %arg11[%c16_96, %c32_97], %230 {strides = array<i32>} : memref<64x64xf32, #tpu.memory_space<vmem>>, vector<8x32xf32>,
    %c48_98 = arith.constant 48 : index
    %c0_99 = arith.constant 0 : index
    %233 = vector.load %arg10[%c48_98, %c0_99] : memref<64x256xf32, #tpu.memory_space<vmem>>, vector<8x128xf32>
    %cst_100 = arith.constant dense<0.000000e+00> : vector<8x128xf32>
    %234 = tpu.matmul %213, %7, %cst_100 {dimension_numbers = #tpu.dot_dimension_numbers<[1], [0], [0], [1], [0, 0, 1, 1], [], []>} : vector<8x32xf32>, vector<32x128xf32>, vector<8x128xf32> -> vector<8x128xf32>
    %235 = arith.addf %234, %233 : vector<8x128xf32>
    %236 = math.tanh %235 : vector<8x128xf32>
    %cst_101 = arith.constant 5.000000e-01 : f32
    %237 = vector.broadcast %cst_101 : f32 to vector<8x128xf32>
    %238 = arith.mulf %237, %236 : vector<8x128xf32>
    %cst_102 = arith.constant 5.000000e-01 : f32
    %239 = vector.broadcast %cst_102 : f32 to vector<8x128xf32>
    %240 = arith.addf %238, %239 : vector<8x128xf32>
    %241 = vector.extract_strided_slice %240 {offsets = [0, 0], sizes = [8, 32], strides = [1, 1]} : vector<8x128xf32> to vector<8x32xf32>
    %242 = vector.extract_strided_slice %240 {offsets = [0, 32], sizes = [8, 32], strides = [1, 1]} : vector<8x128xf32> to vector<8x32xf32>
    %243 = vector.extract_strided_slice %236 {offsets = [0, 64], sizes = [8, 32], strides = [1, 1]} : vector<8x128xf32> to vector<8x32xf32>
    %244 = vector.extract_strided_slice %240 {offsets = [0, 96], sizes = [8, 32], strides = [1, 1]} : vector<8x128xf32> to vector<8x32xf32>
    %245 = arith.mulf %242, %211 : vector<8x32xf32>
    %246 = arith.mulf %241, %243 : vector<8x32xf32>
    %247 = arith.addf %245, %246 : vector<8x32xf32>
    %248 = math.tanh %247 : vector<8x32xf32>
    %249 = arith.mulf %244, %248 : vector<8x32xf32>
    %c8_103 = arith.constant 8 : index
    %c128_104 = arith.constant 128 : index
    %250 = vector.load %arg10[%c8_103, %c128_104] : memref<64x256xf32, #tpu.memory_space<vmem>>, vector<8x128xf32>
    %cst_105 = arith.constant dense<0.000000e+00> : vector<8x128xf32>
    %251 = tpu.matmul %230, %8, %cst_105 {dimension_numbers = #tpu.dot_dimension_numbers<[1], [0], [0], [1], [0, 0, 1, 1], [], []>} : vector<8x32xf32>, vector<32x128xf32>, vector<8x128xf32> -> vector<8x128xf32>
    %252 = arith.addf %251, %250 : vector<8x128xf32>
    %253 = math.tanh %252 : vector<8x128xf32>
    %cst_106 = arith.constant 5.000000e-01 : f32
    %254 = vector.broadcast %cst_106 : f32 to vector<8x128xf32>
    %255 = arith.mulf %254, %253 : vector<8x128xf32>
    %cst_107 = arith.constant 5.000000e-01 : f32
    %256 = vector.broadcast %cst_107 : f32 to vector<8x128xf32>
    %257 = arith.addf %255, %256 : vector<8x128xf32>
    %258 = vector.extract_strided_slice %257 {offsets = [0, 0], sizes = [8, 32], strides = [1, 1]} : vector<8x128xf32> to vector<8x32xf32>
    %259 = vector.extract_strided_slice %257 {offsets = [0, 32], sizes = [8, 32], strides = [1, 1]} : vector<8x128xf32> to vector<8x32xf32>
    %260 = vector.extract_strided_slice %253 {offsets = [0, 64], sizes = [8, 32], strides = [1, 1]} : vector<8x128xf32> to vector<8x32xf32>
    %261 = vector.extract_strided_slice %257 {offsets = [0, 96], sizes = [8, 32], strides = [1, 1]} : vector<8x128xf32> to vector<8x32xf32>
    %262 = arith.mulf %259, %228 : vector<8x32xf32>
    %263 = arith.mulf %258, %260 : vector<8x32xf32>
    %264 = arith.addf %262, %263 : vector<8x32xf32>
    %265 = math.tanh %264 : vector<8x32xf32>
    %266 = arith.mulf %261, %265 : vector<8x32xf32>
    %c48_108 = arith.constant 48 : index
    %c0_109 = arith.constant 0 : index
    %267 = vector.load %arg11[%c48_108, %c0_109] : memref<64x64xf32, #tpu.memory_space<vmem>>, vector<8x32xf32>
    tpu.vector_store %arg11[%c48_108, %c0_109], %249 {strides = array<i32>} : memref<64x64xf32, #tpu.memory_space<vmem>>, vector<8x32xf32>,
    %c8_110 = arith.constant 8 : index
    %c32_111 = arith.constant 32 : index
    %268 = vector.load %arg11[%c8_110, %c32_111] : memref<64x64xf32, #tpu.memory_space<vmem>>, vector<8x32xf32>
    tpu.vector_store %arg11[%c8_110, %c32_111], %266 {strides = array<i32>} : memref<64x64xf32, #tpu.memory_space<vmem>>, vector<8x32xf32>,
    %c56_112 = arith.constant 56 : index
    %c0_113 = arith.constant 0 : index
    %269 = vector.load %arg10[%c56_112, %c0_113] : memref<64x256xf32, #tpu.memory_space<vmem>>, vector<8x128xf32>
    %cst_114 = arith.constant dense<0.000000e+00> : vector<8x128xf32>
    %270 = tpu.matmul %249, %7, %cst_114 {dimension_numbers = #tpu.dot_dimension_numbers<[1], [0], [0], [1], [0, 0, 1, 1], [], []>} : vector<8x32xf32>, vector<32x128xf32>, vector<8x128xf32> -> vector<8x128xf32>
    %271 = arith.addf %270, %269 : vector<8x128xf32>
    %272 = math.tanh %271 : vector<8x128xf32>
    %cst_115 = arith.constant 5.000000e-01 : f32
    %273 = vector.broadcast %cst_115 : f32 to vector<8x128xf32>
    %274 = arith.mulf %273, %272 : vector<8x128xf32>
    %cst_116 = arith.constant 5.000000e-01 : f32
    %275 = vector.broadcast %cst_116 : f32 to vector<8x128xf32>
    %276 = arith.addf %274, %275 : vector<8x128xf32>
    %277 = vector.extract_strided_slice %276 {offsets = [0, 0], sizes = [8, 32], strides = [1, 1]} : vector<8x128xf32> to vector<8x32xf32>
    %278 = vector.extract_strided_slice %276 {offsets = [0, 32], sizes = [8, 32], strides = [1, 1]} : vector<8x128xf32> to vector<8x32xf32>
    %279 = vector.extract_strided_slice %272 {offsets = [0, 64], sizes = [8, 32], strides = [1, 1]} : vector<8x128xf32> to vector<8x32xf32>
    %280 = vector.extract_strided_slice %276 {offsets = [0, 96], sizes = [8, 32], strides = [1, 1]} : vector<8x128xf32> to vector<8x32xf32>
    %281 = arith.mulf %278, %247 : vector<8x32xf32>
    %282 = arith.mulf %277, %279 : vector<8x32xf32>
    %283 = arith.addf %281, %282 : vector<8x32xf32>
    %284 = math.tanh %283 : vector<8x32xf32>
    %285 = arith.mulf %280, %284 : vector<8x32xf32>
    %c0_117 = arith.constant 0 : index
    %c128_118 = arith.constant 128 : index
    %286 = vector.load %arg10[%c0_117, %c128_118] : memref<64x256xf32, #tpu.memory_space<vmem>>, vector<8x128xf32>
    %cst_119 = arith.constant dense<0.000000e+00> : vector<8x128xf32>
    %287 = tpu.matmul %266, %8, %cst_119 {dimension_numbers = #tpu.dot_dimension_numbers<[1], [0], [0], [1], [0, 0, 1, 1], [], []>} : vector<8x32xf32>, vector<32x128xf32>, vector<8x128xf32> -> vector<8x128xf32>
    %288 = arith.addf %287, %286 : vector<8x128xf32>
    %289 = math.tanh %288 : vector<8x128xf32>
    %cst_120 = arith.constant 5.000000e-01 : f32
    %290 = vector.broadcast %cst_120 : f32 to vector<8x128xf32>
    %291 = arith.mulf %290, %289 : vector<8x128xf32>
    %cst_121 = arith.constant 5.000000e-01 : f32
    %292 = vector.broadcast %cst_121 : f32 to vector<8x128xf32>
    %293 = arith.addf %291, %292 : vector<8x128xf32>
    %294 = vector.extract_strided_slice %293 {offsets = [0, 0], sizes = [8, 32], strides = [1, 1]} : vector<8x128xf32> to vector<8x32xf32>
    %295 = vector.extract_strided_slice %293 {offsets = [0, 32], sizes = [8, 32], strides = [1, 1]} : vector<8x128xf32> to vector<8x32xf32>
    %296 = vector.extract_strided_slice %289 {offsets = [0, 64], sizes = [8, 32], strides = [1, 1]} : vector<8x128xf32> to vector<8x32xf32>
    %297 = vector.extract_strided_slice %293 {offsets = [0, 96], sizes = [8, 32], strides = [1, 1]} : vector<8x128xf32> to vector<8x32xf32>
    %298 = arith.mulf %295, %264 : vector<8x32xf32>
    %299 = arith.mulf %294, %296 : vector<8x32xf32>
    %300 = arith.addf %298, %299 : vector<8x32xf32>
    %301 = math.tanh %300 : vector<8x32xf32>
    %302 = arith.mulf %297, %301 : vector<8x32xf32>
    %c56_122 = arith.constant 56 : index
    %c0_123 = arith.constant 0 : index
    %303 = vector.load %arg11[%c56_122, %c0_123] : memref<64x64xf32, #tpu.memory_space<vmem>>, vector<8x32xf32>
    tpu.vector_store %arg11[%c56_122, %c0_123], %285 {strides = array<i32>} : memref<64x64xf32, #tpu.memory_space<vmem>>, vector<8x32xf32>,
    %c0_124 = arith.constant 0 : index
    %c32_125 = arith.constant 32 : index
    %304 = vector.load %arg11[%c0_124, %c32_125] : memref<64x64xf32, #tpu.memory_space<vmem>>, vector<8x32xf32>
    tpu.vector_store %arg11[%c0_124, %c32_125], %302 {strides = array<i32>} : memref<64x64xf32, #tpu.memory_space<vmem>>, vector<8x32xf32>,
    %c0_126 = arith.constant 0 : index
    %c0_127 = arith.constant 0 : index
    %305 = vector.load %arg11[%c0_126, %c0_127] : memref<64x64xf32, #tpu.memory_space<vmem>>, vector<64x64xf32>
    %c0_128 = arith.constant 0 : index
    %c0_129 = arith.constant 0 : index
    %306 = vector.load %arg7[%c0_128, %c0_129] : memref<64x128xf32, #tpu.memory_space<vmem>>, vector<64x128xf32>
    %cst_130 = arith.constant dense<0.000000e+00> : vector<64x128xf32>
    %307 = tpu.matmul %305, %306, %cst_130 {dimension_numbers = #tpu.dot_dimension_numbers<[1], [0], [0], [1], [0, 0, 1, 1], [], []>} : vector<64x64xf32>, vector<64x128xf32>, vector<64x128xf32> -> vector<64x128xf32>
    %c0_131 = arith.constant 0 : index
    %c0_132 = arith.constant 0 : index
    %308 = vector.load %arg8[%c0_131, %c0_132] : memref<1x128xf32, #tpu.memory_space<vmem>>, vector<1x128xf32>
    %309 = vector.broadcast %308 : vector<1x128xf32> to vector<64x128xf32>
    %310 = arith.addf %307, %309 : vector<64x128xf32>
    %c0_133 = arith.constant 0 : index
    %c0_134 = arith.constant 0 : index
    %311 = vector.load %arg9[%c0_133, %c0_134] : memref<64x128xf32, #tpu.memory_space<vmem>>, vector<64x128xf32>
    tpu.vector_store %arg9[%c0_133, %c0_134], %310 {strides = array<i32>} : memref<64x128xf32, #tpu.memory_space<vmem>>, vector<64x128xf32>,
    return
  }
}

</mosaic_0001>

<llo_original>
// kernel: tpu_custom_call.1
$region0: #{tpu_custom_call.1}
  #allocation0 [shape = 'u32[]', space=smem, size = 0x4, offset = 0x4, fixed_abs, tag = 'smem constant byte address 0x4 - core index']
  #allocation1 [shape = 'u32[144,128]{1,0:T(1,128)}', space=vmem, size = 0x12000, scoped, tag = 'internal scratch']
  #allocation2 [shape = 'f32[64,256]{1,0:T(8,128)}', space=vmem, size = 0x10000, scoped, tag = 'scratch operand']
  #allocation3 [shape = 'f32[64,64]{1,0:T(8,128)}', space=vmem, size = 0x8000, scoped, tag = 'scratch operand']
  %s0 = inlined_call_operand.vmem [shape: f32[64,32], index: 0, kind: input, shape index: {}]
  %s1 = inlined_call_operand.hbm [shape: f32[2,8,32], index: 1, kind: input, shape index: {}]
  %s2 = inlined_call_operand.hbm [shape: f32[2,8,32], index: 2, kind: input, shape index: {}]
  %s3 = inlined_call_operand.vmem [shape: f32[32,256], index: 3, kind: input, shape index: {}]
  %s4 = inlined_call_operand.vmem [shape: f32[1,256], index: 4, kind: input, shape index: {}]
  %s5 = inlined_call_operand.vmem [shape: f32[32,128], index: 5, kind: input, shape index: {}]
  %s6 = inlined_call_operand.hbm [shape: f32[32,128], index: 6, kind: input, shape index: {}]
  %s7 = inlined_call_operand.hbm [shape: f32[64,128], index: 7, kind: input, shape index: {}]
  %s8 = inlined_call_operand.vmem [shape: f32[1,128], index: 8, kind: input, shape index: {}]
  %s9 = inlined_call_operand.hbm [shape: f32[64,128], index: 9, kind: output, shape index: {}]
  %s10 = sld [smem:[#allocation0]]
  $region62: #{tpu_custom_call.1} parent=0
    _
  %s12 = ssub.s32 1, %s10
  %s13 = scalar_select 0, %s12, %s10
  $region1: #{tpu_custom_call.1} parent=0
    #allocation4 [shape = 'u8[8192]{0}', space=vmem, size = 0x2000, scoped, tag = 'input window, operand 1, single buffered']
    #allocation5 [shape = 's32[1]{0}', space=sflag, size = 0x4, scoped, tag = 'scoped memory for tpu_custom_call.1']
    #allocation6 [shape = 's32[1]{0}', space=sflag, size = 0x4, scoped, tag = 'scoped memory for tpu_custom_call.1']
    #allocation7 [shape = 'u8[8192]{0}', space=vmem, size = 0x2000, scoped, tag = 'input window, operand 2, single buffered']
    #allocation8 [shape = 's32[1]{0}', space=sflag, size = 0x4, scoped, tag = 'scoped memory for tpu_custom_call.1']
    #allocation9 [shape = 'u8[16384]{0}', space=vmem, size = 0x4000, scoped, tag = 'input window, operand 6, single buffered']
    #allocation10 [shape = 'u8[32768]{0}', space=vmem, size = 0x8000, scoped, tag = 'input window, operand 7, single buffered']
    #allocation11 [shape = 's32[1]{0}', space=sflag, size = 0x4, scoped, tag = 'scoped memory for tpu_custom_call.1']
    #allocation12 [shape = 'u8[32768]{0}', space=vmem, size = 0x8000, scoped, tag = 'output window, operand 0, single buffered']
    %14 = vsyncpa [#allocation5], 0
    %15 = vsyncpa [#allocation8], 0
    %16 = vsyncpa [#allocation11], 0
    %17 = vsyncpa [#allocation6], 0
    // Predicated region
    $region2: #{tpu_custom_call.1} parent=1 // pred_check
      _
    $region3: #{tpu_custom_call.1} parent=1 // pred_check_branch
      %19 = sbr.rel (0) target = $region5
    $region4: #{tpu_custom_call.1} parent=1 // pred_region
      _
    $region5: #{tpu_custom_call.1} parent=1 // pred_fallthru
      _
    // Predicated region
    $region6: #{tpu_custom_call.1} parent=1 // pred_check
      _
    $region7: #{tpu_custom_call.1} parent=1 // pred_check_branch
      %21 = sbr.rel (0) target = $region9
    $region8: #{tpu_custom_call.1} parent=1 // pred_region
      %s23 = ssub.s32 256, 256
      %24 = vsyncadd [#allocation5], %s23
      %s25 = sshll.u32 [#allocation4], 4
      %s26 = int_to_ptr.vmem [resolvable:$true] %s25
      %31 = dma.hbm_to_vmem [thread:$0]  %s1, 256, %s26, [#allocation5], 128, 128, 8
    $region9: #{tpu_custom_call.1} parent=1 // pred_fallthru
      _
    // Predicated region
    $region10: #{tpu_custom_call.1} parent=1 // pred_check
      _
    $region11: #{tpu_custom_call.1} parent=1 // pred_check_branch
      %33 = sbr.rel (0) target = $region13
    $region12: #{tpu_custom_call.1} parent=1 // pred_region
      %s35 = ssub.s32 256, 256
      %36 = vsyncadd [#allocation8], %s35
      %s37 = sshll.u32 [#allocation7], 4
      %s38 = int_to_ptr.vmem [resolvable:$true] %s37
      %43 = dma.hbm_to_vmem [thread:$0]  %s2, 256, %s38, [#allocation8], 128, 128, 8
    $region13: #{tpu_custom_call.1} parent=1 // pred_fallthru
      _
    // Predicated region
    $region14: #{tpu_custom_call.1} parent=1 // pred_check
      _
    $region15: #{tpu_custom_call.1} parent=1 // pred_check_branch
      %45 = sbr.rel (0) target = $region17
    $region16: #{tpu_custom_call.1} parent=1 // pred_region
      _
    $region17: #{tpu_custom_call.1} parent=1 // pred_fallthru
      _
    // Predicated region
    $region18: #{tpu_custom_call.1} parent=1 // pred_check
      _
    $region19: #{tpu_custom_call.1} parent=1 // pred_check_branch
      %47 = sbr.rel (0) target = $region21
    $region20: #{tpu_custom_call.1} parent=1 // pred_region
      _
    $region21: #{tpu_custom_call.1} parent=1 // pred_fallthru
      _
    // Predicated region
    $region22: #{tpu_custom_call.1} parent=1 // pred_check
      _
    $region23: #{tpu_custom_call.1} parent=1 // pred_check_branch
      %49 = sbr.rel (0) target = $region25
    $region24: #{tpu_custom_call.1} parent=1 // pred_region
      _
    $region25: #{tpu_custom_call.1} parent=1 // pred_fallthru
      _
    // Predicated region
    $region26: #{tpu_custom_call.1} parent=1 // pred_check
      _
    $region27: #{tpu_custom_call.1} parent=1 // pred_check_branch
      %51 = sbr.rel (0) target = $region29
    $region28: #{tpu_custom_call.1} parent=1 // pred_region
      %s53 = ssub.s32 512, 512
      %54 = vsyncadd [#allocation8], %s53
      %s55 = sshll.u32 [#allocation9], 4
      %s56 = int_to_ptr.vmem [resolvable:$true] %s55
      %61 = dma.hbm_to_vmem [thread:$0]  %s6, 512, %s56, [#allocation8], 128, 128, 8
    $region29: #{tpu_custom_call.1} parent=1 // pred_fallthru
      _
    // Predicated region
    $region30: #{tpu_custom_call.1} parent=1 // pred_check
      _
    $region31: #{tpu_custom_call.1} parent=1 // pred_check_branch
      %63 = sbr.rel (0) target = $region33
    $region32: #{tpu_custom_call.1} parent=1 // pred_region
      %s65 = ssub.s32 1024, 1024
      %66 = vsyncadd [#allocation11], %s65
      %s67 = sshll.u32 [#allocation10], 4
      %s68 = int_to_ptr.vmem [resolvable:$true] %s67
      %73 = dma.hbm_to_vmem [thread:$0]  %s7, 1024, %s68, [#allocation11], 128, 128, 8
    $region33: #{tpu_custom_call.1} parent=1 // pred_fallthru
      _
    // Predicated region
    $region34: #{tpu_custom_call.1} parent=1 // pred_check
      _
    $region35: #{tpu_custom_call.1} parent=1 // pred_check_branch
      %75 = sbr.rel (0) target = $region37
    $region36: #{tpu_custom_call.1} parent=1 // pred_region
      _
    $region37: #{tpu_custom_call.1} parent=1 // pred_fallthru
      _
    // Predicated region
    $region38: #{tpu_custom_call.1} parent=1 // pred_check
      _
    $region39: #{tpu_custom_call.1} parent=1 // pred_check_branch
      %77 = sbr.rel (0) target = $region41
    $region40: #{tpu_custom_call.1} parent=1 // pred_region
      %78 = dma.done [#allocation5], 256
    $region41: #{tpu_custom_call.1} parent=1 // pred_fallthru
      _
    // Predicated region
    $region42: #{tpu_custom_call.1} parent=1 // pred_check
      _
    $region43: #{tpu_custom_call.1} parent=1 // pred_check_branch
      %80 = sbr.rel (0) target = $region45
    $region44: #{tpu_custom_call.1} parent=1 // pred_region
      %81 = dma.done [#allocation8], 256
    $region45: #{tpu_custom_call.1} parent=1 // pred_fallthru
      _
    // Predicated region
    $region46: #{tpu_custom_call.1} parent=1 // pred_check
      _
    $region47: #{tpu_custom_call.1} parent=1 // pred_check_branch
      %83 = sbr.rel (0) target = $region49
    $region48: #{tpu_custom_call.1} parent=1 // pred_region
      %84 = dma.done [#allocation8], 512
    $region49: #{tpu_custom_call.1} parent=1 // pred_fallthru
      _
    // Predicated region
    $region50: #{tpu_custom_call.1} parent=1 // pred_check
      _
    $region51: #{tpu_custom_call.1} parent=1 // pred_check_branch
      %86 = sbr.rel (0) target = $region53
    $region52: #{tpu_custom_call.1} parent=1 // pred_region
      %87 = dma.done [#allocation11], 1024
    $region53: #{tpu_custom_call.1} parent=1 // pred_fallthru
      _
    %v88 = vld [vmem:[%s0] sm:$0xff]
    %v89 = vld [vmem:[%s0 + $0x8] sm:$0xff]
    %v90 = vld [vmem:[%s0 + $0x10] sm:$0xff]
    %v91 = vld [vmem:[%s0 + $0x18] sm:$0xff]
    %v92 = vld [vmem:[%s0 + $0x20] sm:$0xff]
    %v93 = vld [vmem:[%s0 + $0x28] sm:$0xff]
    %v94 = vld [vmem:[%s0 + $0x30] sm:$0xff]
    %v95 = vld [vmem:[%s0 + $0x38] sm:$0xff]
    %v96 = vld [vmem:[%s3] sm:$0xff]
    %v97 = vld [vmem:[%s3 + $0x8] sm:$0xff]
    %v98 = vld [vmem:[%s3 + $0x10] sm:$0xff]
    %v99 = vld [vmem:[%s3 + $0x18] sm:$0xff]
    %v100 = vld [vmem:[%s3 + $0x20] sm:$0xff]
    %v101 = vld [vmem:[%s3 + $0x28] sm:$0xff]
    %v102 = vld [vmem:[%s3 + $0x30] sm:$0xff]
    %v103 = vld [vmem:[%s3 + $0x38] sm:$0xff]
    %v104 = vld [vmem:[%s4] sm:$0x3]
    %v106 = vlaneseq
    %v107 = vshrl.u32 %v106, 7
    %v108 = vsub.s32 0, %v107
    %v109 = vrot.slane %v104, %v108
    %v110 = vlaneseq
    %v111 = vshrl.u32 %v110, 7
    %v112 = vsub.s32 1, %v111
    %v113 = vrot.slane %v104, %v112
    %vm116 = vcmask 261120
    %v118 = vsel %vm116, %v88, 0
    %v121 = vsel %vm116, %v89, 0
    %v124 = vsel %vm116, %v90, 0
    %v127 = vsel %vm116, %v91, 0
    %v130 = vsel %vm116, %v92, 0
    %v133 = vsel %vm116, %v93, 0
    %v136 = vsel %vm116, %v94, 0
    %v139 = vsel %vm116, %v95, 0
    %141 = vmatprep.subr.mxu0 %v97
    %142 = vmatpush1.msra.mxu0 %v96
    %143 = vmatprep.subr.mxu0 %v99
    %144 = vmatpush1.msra.mxu0 %v98
    %145 = vmatprep.subr.mxu0 %v101
    %146 = vmatpush1.msra.mxu0 %v100
    %147 = vmatprep.subr.mxu0 %v103
    %148 = vmatpush1.msra.mxu0 %v102
    %149 = vmatprep.subr.mxu0 0.0
    %150 = vmatpush1.msra.mxu0 0.0
    %151 = vmatprep.subr.mxu0 0.0
    %152 = vmatpush1.msra.mxu0 0.0
    %153 = vmatprep.subr.mxu0 0.0
    %154 = vmatpush1.msra.mxu0 0.0
    %155 = vmatprep.subr.mxu0 0.0
    %156 = vmatpush1.msra.mxu0 0.0
    %157 = vmatprep.subr.mxu0 0.0
    %158 = vmatpush1.msra.mxu0 0.0
    %159 = vmatprep.subr.mxu0 0.0
    %160 = vmatpush1.msra.mxu0 0.0
    %161 = vmatprep.subr.mxu0 0.0
    %162 = vmatpush1.msra.mxu0 0.0
    %163 = vmatprep.subr.mxu0 0.0
    %164 = vmatpush1.msra.mxu0 0.0
    %165 = vmatprep.subr.mxu0 0.0
    %166 = vmatpush1.msra.mxu0 0.0
    %167 = vmatprep.subr.mxu0 0.0
    %168 = vmatpush1.msra.mxu0 0.0
    %169 = vmatprep.subr.mxu0 0.0
    %170 = vmatpush1.msra.mxu0 0.0
    %171 = vmatprep.subr.mxu0 0.0
    %172 = vmatpush1.msra.mxu0 0.0
    %173 = vmatprep.subr.mxu0 0.0
    %174 = vmatpush1.msra.mxu0 0.0
    %175 = vmatprep.subr.mxu0 0.0
    %176 = vmatpush1.msra.mxu0 0.0
    %177 = vmatprep.subr.mxu0 0.0
    %178 = vmatpush1.msra.mxu0 0.0
    %179 = vmatprep.subr.mxu0 0.0
    %180 = vmatpush1.msra.mxu0 0.0
    %181 = vmatprep.subr.mxu0 0.0
    %182 = vmatpush1.msra.mxu0 0.0
    %183 = vmatprep.subr.mxu0 0.0
    %184 = vmatpush1.msra.mxu0 0.0
    %185 = vmatprep.subr.mxu0 0.0
    %186 = vmatpush1.msra.mxu0 0.0
    %187 = vmatprep.subr.mxu0 0.0
    %188 = vmatpush1.msra.mxu0 0.0
    %189 = vmatprep.subr.mxu0 0.0
    %190 = vmatpush1.msra.mxu0 0.0
    %191 = vmatprep.subr.mxu0 0.0
    %192 = vmatpush1.msra.mxu0 0.0
    %193 = vmatprep.subr.mxu0 0.0
    %194 = vmatpush1.msra.mxu0 0.0
    %195 = vmatprep.subr.mxu0 0.0
    %196 = vmatpush1.msra.mxu0 0.0
    %197 = vmatprep.subr.mxu0 0.0
    %198 = vmatpush1.msra.mxu0 0.0
    %199 = vmatprep.subr.mxu0 0.0
    %200 = vmatpush1.msra.mxu0 0.0
    %201 = vmatprep.subr.mxu0 0.0
    %202 = vmatpush1.msra.mxu0 0.0
    %203 = vmatprep.subr.mxu0 0.0
    %204 = vmatpush1.msra.mxu0 0.0
    %205 = vmatprep.mubr.f32.mxu0 0.0
    %206 = vmatmul.mubr.f32.gmra.mrb[0].mxu0 %v118
    %v207 = vpop.f32.mrb[0].mxu0
    %v208 = vadd.f32 %v109, %v207
    %v209 = vpop.f32.mrb[0].mxu0
    %v210 = vadd.f32 %v113, %v209
    %211 = vmatprep.mubr.f32.mxu0 0.0
    %212 = vmatmul.mubr.f32.gmra.mrb[0].mxu0 %v121
    %v213 = vpop.f32.mrb[0].mxu0
    %v214 = vadd.f32 %v109, %v213
    %v215 = vpop.f32.mrb[0].mxu0
    %v216 = vadd.f32 %v113, %v215
    %217 = vmatprep.mubr.f32.mxu0 0.0
    %218 = vmatmul.mubr.f32.gmra.mrb[0].mxu0 %v124
    %v219 = vpop.f32.mrb[0].mxu0
    %v220 = vadd.f32 %v109, %v219
    %v221 = vpop.f32.mrb[0].mxu0
    %v222 = vadd.f32 %v113, %v221
    %223 = vmatprep.mubr.f32.mxu0 0.0
    %224 = vmatmul.mubr.f32.gmra.mrb[0].mxu0 %v127
    %v225 = vpop.f32.mrb[0].mxu0
    %v226 = vadd.f32 %v109, %v225
    %v227 = vpop.f32.mrb[0].mxu0
    %v228 = vadd.f32 %v113, %v227
    %229 = vmatprep.mubr.f32.mxu0 0.0
    %230 = vmatmul.mubr.f32.gmra.mrb[0].mxu0 %v130
    %v231 = vpop.f32.mrb[0].mxu0
    %v232 = vadd.f32 %v109, %v231
    %v233 = vpop.f32.mrb[0].mxu0
    %v234 = vadd.f32 %v113, %v233
    %235 = vmatprep.mubr.f32.mxu0 0.0
    %236 = vmatmul.mubr.f32.gmra.mrb[0].mxu0 %v133
    %v237 = vpop.f32.mrb[0].mxu0
    %v238 = vadd.f32 %v109, %v237
    %v239 = vpop.f32.mrb[0].mxu0
    %v240 = vadd.f32 %v113, %v239
    %241 = vmatprep.mubr.f32.mxu0 0.0
    %242 = vmatmul.mubr.f32.gmra.mrb[0].mxu0 %v136
    %v243 = vpop.f32.mrb[0].mxu0
    %v244 = vadd.f32 %v109, %v243
    %v245 = vpop.f32.mrb[0].mxu0
    %v246 = vadd.f32 %v113, %v245
    %247 = vmatprep.mubr.f32.mxu0 0.0
    %248 = vmatmul.mubr.f32.gmra.mrb[0].mxu0 %v139
    %v249 = vpop.f32.mrb[0].mxu0
    %v250 = vadd.f32 %v109, %v249
    %v251 = vpop.f32.mrb[0].mxu0
    %v252 = vadd.f32 %v113, %v251
    %253 = vdwg.mxu0
    %254 = vst [vmem:[#allocation2] sm:$0xff] %v208
    %255 = vst [vmem:[#allocation2 + $0x8] sm:$0xff] %v210
    %256 = vst [vmem:[#allocation2 + $0x10] sm:$0xff] %v214
    %257 = vst [vmem:[#allocation2 + $0x18] sm:$0xff] %v216
    %258 = vst [vmem:[#allocation2 + $0x20] sm:$0xff] %v220
    %259 = vst [vmem:[#allocation2 + $0x28] sm:$0xff] %v222
    %260 = vst [vmem:[#allocation2 + $0x30] sm:$0xff] %v226
    %261 = vst [vmem:[#allocation2 + $0x38] sm:$0xff] %v228
    %262 = vst [vmem:[#allocation2 + $0x40] sm:$0xff] %v232
    %263 = vst [vmem:[#allocation2 + $0x48] sm:$0xff] %v234
    %264 = vst [vmem:[#allocation2 + $0x50] sm:$0xff] %v238
    %265 = vst [vmem:[#allocation2 + $0x58] sm:$0xff] %v240
    %266 = vst [vmem:[#allocation2 + $0x60] sm:$0xff] %v244
    %267 = vst [vmem:[#allocation2 + $0x68] sm:$0xff] %v246
    %268 = vst [vmem:[#allocation2 + $0x70] sm:$0xff] %v250
    %269 = vst [vmem:[#allocation2 + $0x78] sm:$0xff] %v252
    %v270 = vld [vmem:[%s5] sm:$0xff]
    %v271 = vld [vmem:[%s5 + $0x8] sm:$0xff]
    %v272 = vld [vmem:[%s5 + $0x10] sm:$0xff]
    %v273 = vld [vmem:[%s5 + $0x18] sm:$0xff]
    %v274 = vld [vmem:[#allocation9] sm:$0xff]
    %v275 = vld [vmem:[#allocation9 + $0x8] sm:$0xff]
    %v276 = vld [vmem:[#allocation9 + $0x10] sm:$0xff]
    %v277 = vld [vmem:[#allocation9 + $0x18] sm:$0xff]
    %v278 = vld [vmem:[#allocation4] sm:$0xff]
    %v279 = vld [vmem:[#allocation7] sm:$0xff]
    %s280 = scalar_lea.vmem [#allocation4], 8
    %v281 = vld [vmem:[%s280] sm:$0xff]
    %s282 = scalar_lea.vmem [#allocation7], 8
    %v283 = vld [vmem:[%s282] sm:$0xff]
    %v284 = vld [vmem:[#allocation2] sm:$0xff]
    %v286 = vsel %vm116, %v278, 0
    %288 = vmatprep.subr.mxu0 0.0
    %289 = vmatpush1.msra.mxu0 %v270
    %290 = vmatprep.subr.mxu0 0.0
    %291 = vmatpush1.msra.mxu0 %v271
    %292 = vmatprep.subr.mxu0 0.0
    %293 = vmatpush1.msra.mxu0 %v272
    %294 = vmatprep.subr.mxu0 0.0
    %295 = vmatpush1.msra.mxu0 %v273
    %296 = vmatprep.subr.mxu0 0.0
    %297 = vmatpush1.msra.mxu0 0.0
    %298 = vmatprep.subr.mxu0 0.0
    %299 = vmatpush1.msra.mxu0 0.0
    %300 = vmatprep.subr.mxu0 0.0
    %301 = vmatpush1.msra.mxu0 0.0
    %302 = vmatprep.subr.mxu0 0.0
    %303 = vmatpush1.msra.mxu0 0.0
    %304 = vmatprep.subr.mxu0 0.0
    %305 = vmatpush1.msra.mxu0 0.0
    %306 = vmatprep.subr.mxu0 0.0
    %307 = vmatpush1.msra.mxu0 0.0
    %308 = vmatprep.subr.mxu0 0.0
    %309 = vmatpush1.msra.mxu0 0.0
    %310 = vmatprep.subr.mxu0 0.0
    %311 = vmatpush1.msra.mxu0 0.0
    %312 = vmatprep.subr.mxu0 0.0
    %313 = vmatpush1.msra.mxu0 0.0
    %314 = vmatprep.subr.mxu0 0.0
    %315 = vmatpush1.msra.mxu0 0.0
    %316 = vmatprep.subr.mxu0 0.0
    %317 = vmatpush1.msra.mxu0 0.0
    %318 = vmatprep.subr.mxu0 0.0
    %319 = vmatpush1.msra.mxu0 0.0
    %320 = vmatprep.subr.mxu0 0.0
    %321 = vmatpush1.msra.mxu0 0.0
    %322 = vmatprep.subr.mxu0 0.0
    %323 = vmatpush1.msra.mxu0 0.0
    %324 = vmatprep.subr.mxu0 0.0
    %325 = vmatpush1.msra.mxu0 0.0
    %326 = vmatprep.subr.mxu0 0.0
    %327 = vmatpush1.msra.mxu0 0.0
    %328 = vmatprep.subr.mxu0 0.0
    %329 = vmatpush1.msra.mxu0 0.0
    %330 = vmatprep.subr.mxu0 0.0
    %331 = vmatpush1.msra.mxu0 0.0
    %332 = vmatprep.subr.mxu0 0.0
    %333 = vmatpush1.msra.mxu0 0.0
    %334 = vmatprep.subr.mxu0 0.0
    %335 = vmatpush1.msra.mxu0 0.0
    %336 = vmatprep.subr.mxu0 0.0
    %337 = vmatpush1.msra.mxu0 0.0
    %338 = vmatprep.subr.mxu0 0.0
    %339 = vmatpush1.msra.mxu0 0.0
    %340 = vmatprep.subr.mxu0 0.0
    %341 = vmatpush1.msra.mxu0 0.0
    %342 = vmatprep.subr.mxu0 0.0
    %343 = vmatpush1.msra.mxu0 0.0
    %344 = vmatprep.subr.mxu0 0.0
    %345 = vmatpush1.msra.mxu0 0.0
    %346 = vmatprep.subr.mxu0 0.0
    %347 = vmatpush1.msra.mxu0 0.0
    %348 = vmatprep.subr.mxu0 0.0
    %349 = vmatpush1.msra.mxu0 0.0
    %350 = vmatprep.subr.mxu0 0.0
    %351 = vmatpush1.msra.mxu0 0.0
    %352 = vmatprep.mubr.f32.mxu0 0.0
    %353 = vmatmul.mubr.f32.gmra.mrb[0].mxu0 %v286
    %v354 = vpop.f32.mrb[0].mxu0
    %v355 = vadd.f32 %v284, %v354
    %v356 = vpop.f32.mrb[0].mxu0
    %357 = vdwg.mxu0
    %v358 = vtanh.pop %v355
    %v359 = vmul.f32 %v358, 0.5
    %v360 = vadd.f32 %v359, 0.5
    %362 = vrot.lane.b32.xlu0 %v279, 32
    %v363 = vpop.permute.xlu0 %362
    %v365 = vmul.f32 %v360, %v363
    %367 = vrot.lane.b32.xlu0 %v358, 64
    %v368 = vpop.permute.xlu0 %367
    %v370 = vmul.f32 %v360, %v368
    %372 = vrot.lane.b32.xlu0 %v370, 32
    %v373 = vpop.permute.xlu0 %372
    %v375 = vadd.f32 %v365, %v373
    %v376 = vtanh.pop %v375
    %378 = vrot.lane.b32.xlu0 %v376, 64
    %v379 = vpop.permute.xlu0 %378
    %v381 = vmul.f32 %v360, %v379
    %v382 = vld [vmem:[#allocation2 + $0x78] sm:$0xff]
    %v384 = vsel %vm116, %v281, 0
    %386 = vmatprep.subr.mxu0 0.0
    %387 = vmatpush1.msra.mxu0 %v274
    %388 = vmatprep.subr.mxu0 0.0
    %389 = vmatpush1.msra.mxu0 %v275
    %390 = vmatprep.subr.mxu0 0.0
    %391 = vmatpush1.msra.mxu0 %v276
    %392 = vmatprep.subr.mxu0 0.0
    %393 = vmatpush1.msra.mxu0 %v277
    %394 = vmatprep.subr.mxu0 0.0
    %395 = vmatpush1.msra.mxu0 0.0
    %396 = vmatprep.subr.mxu0 0.0
    %397 = vmatpush1.msra.mxu0 0.0
    %398 = vmatprep.subr.mxu0 0.0
    %399 = vmatpush1.msra.mxu0 0.0
    %400 = vmatprep.subr.mxu0 0.0
    %401 = vmatpush1.msra.mxu0 0.0
    %402 = vmatprep.subr.mxu0 0.0
    %403 = vmatpush1.msra.mxu0 0.0
    %404 = vmatprep.subr.mxu0 0.0
    %405 = vmatpush1.msra.mxu0 0.0
    %406 = vmatprep.subr.mxu0 0.0
    %407 = vmatpush1.msra.mxu0 0.0
    %408 = vmatprep.subr.mxu0 0.0
    %409 = vmatpush1.msra.mxu0 0.0
    %410 = vmatprep.subr.mxu0 0.0
    %411 = vmatpush1.msra.mxu0 0.0
    %412 = vmatprep.subr.mxu0 0.0
    %413 = vmatpush1.msra.mxu0 0.0
    %414 = vmatprep.subr.mxu0 0.0
    %415 = vmatpush1.msra.mxu0 0.0
    %416 = vmatprep.subr.mxu0 0.0
    %417 = vmatpush1.msra.mxu0 0.0
    %418 = vmatprep.subr.mxu0 0.0
    %419 = vmatpush1.msra.mxu0 0.0
    %420 = vmatprep.subr.mxu0 0.0
    %421 = vmatpush1.msra.mxu0 0.0
    %422 = vmatprep.subr.mxu0 0.0
    %423 = vmatpush1.msra.mxu0 0.0
    %424 = vmatprep.subr.mxu0 0.0
    %425 = vmatpush1.msra.mxu0 0.0
    %426 = vmatprep.subr.mxu0 0.0
    %427 = vmatpush1.msra.mxu0 0.0
    %428 = vmatprep.subr.mxu0 0.0
    %429 = vmatpush1.msra.mxu0 0.0
    %430 = vmatprep.subr.mxu0 0.0
    %431 = vmatpush1.msra.mxu0 0.0
    %432 = vmatprep.subr.mxu0 0.0
    %433 = vmatpush1.msra.mxu0 0.0
    %434 = vmatprep.subr.mxu0 0.0
    %435 = vmatpush1.msra.mxu0 0.0
    %436 = vmatprep.subr.mxu0 0.0
    %437 = vmatpush1.msra.mxu0 0.0
    %438 = vmatprep.subr.mxu0 0.0
    %439 = vmatpush1.msra.mxu0 0.0
    %440 = vmatprep.subr.mxu0 0.0
    %441 = vmatpush1.msra.mxu0 0.0
    %442 = vmatprep.subr.mxu0 0.0
    %443 = vmatpush1.msra.mxu0 0.0
    %444 = vmatprep.subr.mxu0 0.0
    %445 = vmatpush1.msra.mxu0 0.0
    %446 = vmatprep.subr.mxu0 0.0
    %447 = vmatpush1.msra.mxu0 0.0
    %448 = vmatprep.subr.mxu0 0.0
    %449 = vmatpush1.msra.mxu0 0.0
    %450 = vmatprep.mubr.f32.mxu0 0.0
    %451 = vmatmul.mubr.f32.gmra.mrb[0].mxu0 %v384
    %v452 = vpop.f32.mrb[0].mxu0
    %v453 = vadd.f32 %v382, %v452
    %v454 = vpop.f32.mrb[0].mxu0
    %455 = vdwg.mxu0
    %v456 = vtanh.pop %v453
    %v457 = vmul.f32 %v456, 0.5
    %v458 = vadd.f32 %v457, 0.5
    %460 = vrot.lane.b32.xlu0 %v283, 32
    %v461 = vpop.permute.xlu0 %460
    %v463 = vmul.f32 %v458, %v461
    %465 = vrot.lane.b32.xlu0 %v456, 64
    %v466 = vpop.permute.xlu0 %465
    %v468 = vmul.f32 %v458, %v466
    %470 = vrot.lane.b32.xlu0 %v468, 32
    %v471 = vpop.permute.xlu0 %470
    %v473 = vadd.f32 %v463, %v471
    %v474 = vtanh.pop %v473
    %476 = vrot.lane.b32.xlu0 %v474, 64
    %v477 = vpop.permute.xlu0 %476
    %v479 = vmul.f32 %v458, %v477
    %481 = vrot.lane.b32.xlu0 %v381, 32
    %v482 = vpop.permute.xlu0 %481
    %484 = vst.msk [vmem:[#allocation3] sm:$0xff] %vm116, %v482
    %486 = vrot.lane.b32.xlu0 %v479, 64
    %v487 = vpop.permute.xlu0 %486
    %vm489 = vcmask 523520
    %490 = vst.msk [vmem:[#allocation3 + $0x38] sm:$0xff] %vm489, %v487
    %v491 = vld [vmem:[#allocation2 + $0x10] sm:$0xff]
    %v492 = vsel %vm116, %v482, 0
    %494 = vmatprep.subr.mxu0 0.0
    %495 = vmatpush1.msra.mxu0 %v270
    %496 = vmatprep.subr.mxu0 0.0
    %497 = vmatpush1.msra.mxu0 %v271
    %498 = vmatprep.subr.mxu0 0.0
    %499 = vmatpush1.msra.mxu0 %v272
    %500 = vmatprep.subr.mxu0 0.0
    %501 = vmatpush1.msra.mxu0 %v273
    %502 = vmatprep.subr.mxu0 0.0
    %503 = vmatpush1.msra.mxu0 0.0
    %504 = vmatprep.subr.mxu0 0.0
    %505 = vmatpush1.msra.mxu0 0.0
    %506 = vmatprep.subr.mxu0 0.0
    %507 = vmatpush1.msra.mxu0 0.0
    %508 = vmatprep.subr.mxu0 0.0
    %509 = vmatpush1.msra.mxu0 0.0
    %510 = vmatprep.subr.mxu0 0.0
    %511 = vmatpush1.msra.mxu0 0.0
    %512 = vmatprep.subr.mxu0 0.0
    %513 = vmatpush1.msra.mxu0 0.0
    %514 = vmatprep.subr.mxu0 0.0
    %515 = vmatpush1.msra.mxu0 0.0
    %516 = vmatprep.subr.mxu0 0.0
    %517 = vmatpush1.msra.mxu0 0.0
    %518 = vmatprep.subr.mxu0 0.0
    %519 = vmatpush1.msra.mxu0 0.0
    %520 = vmatprep.subr.mxu0 0.0
    %521 = vmatpush1.msra.mxu0 0.0
    %522 = vmatprep.subr.mxu0 0.0
    %523 = vmatpush1.msra.mxu0 0.0
    %524 = vmatprep.subr.mxu0 0.0
    %525 = vmatpush1.msra.mxu0 0.0
    %526 = vmatprep.subr.mxu0 0.0
    %527 = vmatpush1.msra.mxu0 0.0
    %528 = vmatprep.subr.mxu0 0.0
    %529 = vmatpush1.msra.mxu0 0.0
    %530 = vmatprep.subr.mxu0 0.0
    %531 = vmatpush1.msra.mxu0 0.0
    %532 = vmatprep.subr.mxu0 0.0
    %533 = vmatpush1.msra.mxu0 0.0
    %534 = vmatprep.subr.mxu0 0.0
    %535 = vmatpush1.msra.mxu0 0.0
    %536 = vmatprep.subr.mxu0 0.0
    %537 = vmatpush1.msra.mxu0 0.0
    %538 = vmatprep.subr.mxu0 0.0
    %539 = vmatpush1.msra.mxu0 0.0
    %540 = vmatprep.subr.mxu0 0.0
    %541 = vmatpush1.msra.mxu0 0.0
    %542 = vmatprep.subr.mxu0 0.0
    %543 = vmatpush1.msra.mxu0 0.0
    %544 = vmatprep.subr.mxu0 0.0
    %545 = vmatpush1.msra.mxu0 0.0
    %546 = vmatprep.subr.mxu0 0.0
    %547 = vmatpush1.msra.mxu0 0.0
    %548 = vmatprep.subr.mxu0 0.0
    %549 = vmatpush1.msra.mxu0 0.0
    %550 = vmatprep.subr.mxu0 0.0
    %551 = vmatpush1.msra.mxu0 0.0
    %552 = vmatprep.subr.mxu0 0.0
    %553 = vmatpush1.msra.mxu0 0.0
    %554 = vmatprep.subr.mxu0 0.0
    %555 = vmatpush1.msra.mxu0 0.0
    %556 = vmatprep.subr.mxu0 0.0
    %557 = vmatpush1.msra.mxu0 0.0
    %558 = vmatprep.mubr.f32.mxu0 0.0
    %559 = vmatmul.mubr.f32.gmra.mrb[0].mxu0 %v492
    %v560 = vpop.f32.mrb[0].mxu0
    %v561 = vadd.f32 %v491, %v560
    %v562 = vpop.f32.mrb[0].mxu0
    %563 = vdwg.mxu0
    %v564 = vtanh.pop %v561
    %v565 = vmul.f32 %v564, 0.5
    %v566 = vadd.f32 %v565, 0.5
    %v567 = vmul.f32 %v566, %v375
    %569 = vrot.lane.b32.xlu0 %v564, 64
    %v570 = vpop.permute.xlu0 %569
    %v572 = vmul.f32 %v566, %v570
    %574 = vrot.lane.b32.xlu0 %v572, 32
    %v575 = vpop.permute.xlu0 %574
    %v577 = vadd.f32 %v567, %v575
    %v578 = vtanh.pop %v577
    %580 = vrot.lane.b32.xlu0 %v578, 64
    %v581 = vpop.permute.xlu0 %580
    %v583 = vmul.f32 %v566, %v581
    %v584 = vld [vmem:[#allocation2 + $0x68] sm:$0xff]
    %585 = vrot.lane.b32.xlu0 %v479, 32
    %v586 = vpop.permute.xlu0 %585
    %v587 = vsel %vm116, %v586, 0
    %589 = vmatprep.subr.mxu0 0.0
    %590 = vmatpush1.msra.mxu0 %v274
    %591 = vmatprep.subr.mxu0 0.0
    %592 = vmatpush1.msra.mxu0 %v275
    %593 = vmatprep.subr.mxu0 0.0
    %594 = vmatpush1.msra.mxu0 %v276
    %595 = vmatprep.subr.mxu0 0.0
    %596 = vmatpush1.msra.mxu0 %v277
    %597 = vmatprep.subr.mxu0 0.0
    %598 = vmatpush1.msra.mxu0 0.0
    %599 = vmatprep.subr.mxu0 0.0
    %600 = vmatpush1.msra.mxu0 0.0
    %601 = vmatprep.subr.mxu0 0.0
    %602 = vmatpush1.msra.mxu0 0.0
    %603 = vmatprep.subr.mxu0 0.0
    %604 = vmatpush1.msra.mxu0 0.0
    %605 = vmatprep.subr.mxu0 0.0
    %606 = vmatpush1.msra.mxu0 0.0
    %607 = vmatprep.subr.mxu0 0.0
    %608 = vmatpush1.msra.mxu0 0.0
    %609 = vmatprep.subr.mxu0 0.0
    %610 = vmatpush1.msra.mxu0 0.0
    %611 = vmatprep.subr.mxu0 0.0
    %612 = vmatpush1.msra.mxu0 0.0
    %613 = vmatprep.subr.mxu0 0.0
    %614 = vmatpush1.msra.mxu0 0.0
    %615 = vmatprep.subr.mxu0 0.0
    %616 = vmatpush1.msra.mxu0 0.0
    %617 = vmatprep.subr.mxu0 0.0
    %618 = vmatpush1.msra.mxu0 0.0
    %619 = vmatprep.subr.mxu0 0.0
    %620 = vmatpush1.msra.mxu0 0.0
    %621 = vmatprep.subr.mxu0 0.0
    %622 = vmatpush1.msra.mxu0 0.0
    %623 = vmatprep.subr.mxu0 0.0
    %624 = vmatpush1.msra.mxu0 0.0
    %625 = vmatprep.subr.mxu0 0.0
    %626 = vmatpush1.msra.mxu0 0.0
    %627 = vmatprep.subr.mxu0 0.0
    %628 = vmatpush1.msra.mxu0 0.0
    %629 = vmatprep.subr.mxu0 0.0
    %630 = vmatpush1.msra.mxu0 0.0
    %631 = vmatprep.subr.mxu0 0.0
    %632 = vmatpush1.msra.mxu0 0.0
    %633 = vmatprep.subr.mxu0 0.0
    %634 = vmatpush1.msra.mxu0 0.0
    %635 = vmatprep.subr.mxu0 0.0
    %636 = vmatpush1.msra.mxu0 0.0
    %637 = vmatprep.subr.mxu0 0.0
    %638 = vmatpush1.msra.mxu0 0.0
    %639 = vmatprep.subr.mxu0 0.0
    %640 = vmatpush1.msra.mxu0 0.0
    %641 = vmatprep.subr.mxu0 0.0
    %642 = vmatpush1.msra.mxu0 0.0
    %643 = vmatprep.subr.mxu0 0.0
    %644 = vmatpush1.msra.mxu0 0.0
    %645 = vmatprep.subr.mxu0 0.0
    %646 = vmatpush1.msra.mxu0 0.0
    %647 = vmatprep.subr.mxu0 0.0
    %648 = vmatpush1.msra.mxu0 0.0
    %649 = vmatprep.subr.mxu0 0.0
    %650 = vmatpush1.msra.mxu0 0.0
    %651 = vmatprep.subr.mxu0 0.0
    %652 = vmatpush1.msra.mxu0 0.0
    %653 = vmatprep.mubr.f32.mxu0 0.0
    %654 = vmatmul.mubr.f32.gmra.mrb[0].mxu0 %v587
    %v655 = vpop.f32.mrb[0].mxu0
    %v656 = vadd.f32 %v584, %v655
    %v657 = vpop.f32.mrb[0].mxu0
    %658 = vdwg.mxu0
    %v659 = vtanh.pop %v656
    %v660 = vmul.f32 %v659, 0.5
    %v661 = vadd.f32 %v660, 0.5
    %v662 = vmul.f32 %v661, %v473
    %664 = vrot.lane.b32.xlu0 %v659, 64
    %v665 = vpop.permute.xlu0 %664
    %v667 = vmul.f32 %v661, %v665
    %669 = vrot.lane.b32.xlu0 %v667, 32
    %v670 = vpop.permute.xlu0 %669
    %v672 = vadd.f32 %v662, %v670
    %v673 = vtanh.pop %v672
    %675 = vrot.lane.b32.xlu0 %v673, 64
    %v676 = vpop.permute.xlu0 %675
    %v678 = vmul.f32 %v661, %v676
    %680 = vrot.lane.b32.xlu0 %v583, 32
    %v681 = vpop.permute.xlu0 %680
    %683 = vst.msk [vmem:[#allocation3 + $0x8] sm:$0xff] %vm116, %v681
    %685 = vrot.lane.b32.xlu0 %v678, 64
    %v686 = vpop.permute.xlu0 %685
    %688 = vst.msk [vmem:[#allocation3 + $0x30] sm:$0xff] %vm489, %v686
    %v689 = vld [vmem:[#allocation2 + $0x20] sm:$0xff]
    %v690 = vsel %vm116, %v681, 0
    %692 = vmatprep.subr.mxu0 0.0
    %693 = vmatpush1.msra.mxu0 %v270
    %694 = vmatprep.subr.mxu0 0.0
    %695 = vmatpush1.msra.mxu0 %v271
    %696 = vmatprep.subr.mxu0 0.0
    %697 = vmatpush1.msra.mxu0 %v272
    %698 = vmatprep.subr.mxu0 0.0
    %699 = vmatpush1.msra.mxu0 %v273
    %700 = vmatprep.subr.mxu0 0.0
    %701 = vmatpush1.msra.mxu0 0.0
    %702 = vmatprep.subr.mxu0 0.0
    %703 = vmatpush1.msra.mxu0 0.0
    %704 = vmatprep.subr.mxu0 0.0
    %705 = vmatpush1.msra.mxu0 0.0
    %706 = vmatprep.subr.mxu0 0.0
    %707 = vmatpush1.msra.mxu0 0.0
    %708 = vmatprep.subr.mxu0 0.0
    %709 = vmatpush1.msra.mxu0 0.0
    %710 = vmatprep.subr.mxu0 0.0
    %711 = vmatpush1.msra.mxu0 0.0
    %712 = vmatprep.subr.mxu0 0.0
    %713 = vmatpush1.msra.mxu0 0.0
    %714 = vmatprep.subr.mxu0 0.0
    %715 = vmatpush1.msra.mxu0 0.0
    %716 = vmatprep.subr.mxu0 0.0
    %717 = vmatpush1.msra.mxu0 0.0
    %718 = vmatprep.subr.mxu0 0.0
    %719 = vmatpush1.msra.mxu0 0.0
    %720 = vmatprep.subr.mxu0 0.0
    %721 = vmatpush1.msra.mxu0 0.0
    %722 = vmatprep.subr.mxu0 0.0
    %723 = vmatpush1.msra.mxu0 0.0
    %724 = vmatprep.subr.mxu0 0.0
    %725 = vmatpush1.msra.mxu0 0.0
    %726 = vmatprep.subr.mxu0 0.0
    %727 = vmatpush1.msra.mxu0 0.0
    %728 = vmatprep.subr.mxu0 0.0
    %729 = vmatpush1.msra.mxu0 0.0
    %730 = vmatprep.subr.mxu0 0.0
    %731 = vmatpush1.msra.mxu0 0.0
    %732 = vmatprep.subr.mxu0 0.0
    %733 = vmatpush1.msra.mxu0 0.0
    %734 = vmatprep.subr.mxu0 0.0
    %735 = vmatpush1.msra.mxu0 0.0
    %736 = vmatprep.subr.mxu0 0.0
    %737 = vmatpush1.msra.mxu0 0.0
    %738 = vmatprep.subr.mxu0 0.0
    %739 = vmatpush1.msra.mxu0 0.0
    %740 = vmatprep.subr.mxu0 0.0
    %741 = vmatpush1.msra.mxu0 0.0
    %742 = vmatprep.subr.mxu0 0.0
    %743 = vmatpush1.msra.mxu0 0.0
    %744 = vmatprep.subr.mxu0 0.0
    %745 = vmatpush1.msra.mxu0 0.0
    %746 = vmatprep.subr.mxu0 0.0
    %747 = vmatpush1.msra.mxu0 0.0
    %748 = vmatprep.subr.mxu0 0.0
    %749 = vmatpush1.msra.mxu0 0.0
    %750 = vmatprep.subr.mxu0 0.0
    %751 = vmatpush1.msra.mxu0 0.0
    %752 = vmatprep.subr.mxu0 0.0
    %753 = vmatpush1.msra.mxu0 0.0
    %754 = vmatprep.subr.mxu0 0.0
    %755 = vmatpush1.msra.mxu0 0.0
    %756 = vmatprep.mubr.f32.mxu0 0.0
    %757 = vmatmul.mubr.f32.gmra.mrb[0].mxu0 %v690
    %v758 = vpop.f32.mrb[0].mxu0
    %v759 = vadd.f32 %v689, %v758
    %v760 = vpop.f32.mrb[0].mxu0
    %761 = vdwg.mxu0
    %v762 = vtanh.pop %v759
    %v763 = vmul.f32 %v762, 0.5
    %v764 = vadd.f32 %v763, 0.5
    %v765 = vmul.f32 %v764, %v577
    %767 = vrot.lane.b32.xlu0 %v762, 64
    %v768 = vpop.permute.xlu0 %767
    %v770 = vmul.f32 %v764, %v768
    %772 = vrot.lane.b32.xlu0 %v770, 32
    %v773 = vpop.permute.xlu0 %772
    %v775 = vadd.f32 %v765, %v773
    %v776 = vtanh.pop %v775
    %778 = vrot.lane.b32.xlu0 %v776, 64
    %v779 = vpop.permute.xlu0 %778
    %v781 = vmul.f32 %v764, %v779
    %v782 = vld [vmem:[#allocation2 + $0x58] sm:$0xff]
    %783 = vrot.lane.b32.xlu0 %v678, 32
    %v784 = vpop.permute.xlu0 %783
    %v785 = vsel %vm116, %v784, 0
    %787 = vmatprep.subr.mxu0 0.0
    %788 = vmatpush1.msra.mxu0 %v274
    %789 = vmatprep.subr.mxu0 0.0
    %790 = vmatpush1.msra.mxu0 %v275
    %791 = vmatprep.subr.mxu0 0.0
    %792 = vmatpush1.msra.mxu0 %v276
    %793 = vmatprep.subr.mxu0 0.0
    %794 = vmatpush1.msra.mxu0 %v277
    %795 = vmatprep.subr.mxu0 0.0
    %796 = vmatpush1.msra.mxu0 0.0
    %797 = vmatprep.subr.mxu0 0.0
    %798 = vmatpush1.msra.mxu0 0.0
    %799 = vmatprep.subr.mxu0 0.0
    %800 = vmatpush1.msra.mxu0 0.0
    %801 = vmatprep.subr.mxu0 0.0
    %802 = vmatpush1.msra.mxu0 0.0
    %803 = vmatprep.subr.mxu0 0.0
    %804 = vmatpush1.msra.mxu0 0.0
    %805 = vmatprep.subr.mxu0 0.0
    %806 = vmatpush1.msra.mxu0 0.0
    %807 = vmatprep.subr.mxu0 0.0
    %808 = vmatpush1.msra.mxu0 0.0
    %809 = vmatprep.subr.mxu0 0.0
    %810 = vmatpush1.msra.mxu0 0.0
    %811 = vmatprep.subr.mxu0 0.0
    %812 = vmatpush1.msra.mxu0 0.0
    %813 = vmatprep.subr.mxu0 0.0
    %814 = vmatpush1.msra.mxu0 0.0
    %815 = vmatprep.subr.mxu0 0.0
    %816 = vmatpush1.msra.mxu0 0.0
    %817 = vmatprep.subr.mxu0 0.0
    %818 = vmatpush1.msra.mxu0 0.0
    %819 = vmatprep.subr.mxu0 0.0
    %820 = vmatpush1.msra.mxu0 0.0
    %821 = vmatprep.subr.mxu0 0.0
    %822 = vmatpush1.msra.mxu0 0.0
    %823 = vmatprep.subr.mxu0 0.0
    %824 = vmatpush1.msra.mxu0 0.0
    %825 = vmatprep.subr.mxu0 0.0
    %826 = vmatpush1.msra.mxu0 0.0
    %827 = vmatprep.subr.mxu0 0.0
    %828 = vmatpush1.msra.mxu0 0.0
    %829 = vmatprep.subr.mxu0 0.0
    %830 = vmatpush1.msra.mxu0 0.0
    %831 = vmatprep.subr.mxu0 0.0
    %832 = vmatpush1.msra.mxu0 0.0
    %833 = vmatprep.subr.mxu0 0.0
    %834 = vmatpush1.msra.mxu0 0.0
    %835 = vmatprep.subr.mxu0 0.0
    %836 = vmatpush1.msra.mxu0 0.0
    %837 = vmatprep.subr.mxu0 0.0
    %838 = vmatpush1.msra.mxu0 0.0
    %839 = vmatprep.subr.mxu0 0.0
    %840 = vmatpush1.msra.mxu0 0.0
    %841 = vmatprep.subr.mxu0 0.0
    %842 = vmatpush1.msra.mxu0 0.0
    %843 = vmatprep.subr.mxu0 0.0
    %844 = vmatpush1.msra.mxu0 0.0
    %845 = vmatprep.subr.mxu0 0.0
    %846 = vmatpush1.msra.mxu0 0.0
    %847 = vmatprep.subr.mxu0 0.0
    %848 = vmatpush1.msra.mxu0 0.0
    %849 = vmatprep.subr.mxu0 0.0
    %850 = vmatpush1.msra.mxu0 0.0
    %851 = vmatprep.mubr.f32.mxu0 0.0
    %852 = vmatmul.mubr.f32.gmra.mrb[0].mxu0 %v785
    %v853 = vpop.f32.mrb[0].mxu0
    %v854 = vadd.f32 %v782, %v853
    %v855 = vpop.f32.mrb[0].mxu0
    %856 = vdwg.mxu0
    %v857 = vtanh.pop %v854
    %v858 = vmul.f32 %v857, 0.5
    %v859 = vadd.f32 %v858, 0.5
    %v860 = vmul.f32 %v859, %v672
    %862 = vrot.lane.b32.xlu0 %v857, 64
    %v863 = vpop.permute.xlu0 %862
    %v865 = vmul.f32 %v859, %v863
    %867 = vrot.lane.b32.xlu0 %v865, 32
    %v868 = vpop.permute.xlu0 %867
    %v870 = vadd.f32 %v860, %v868
    %v871 = vtanh.pop %v870
    %873 = vrot.lane.b32.xlu0 %v871, 64
    %v874 = vpop.permute.xlu0 %873
    %v876 = vmul.f32 %v859, %v874
    %878 = vrot.lane.b32.xlu0 %v781, 32
    %v879 = vpop.permute.xlu0 %878
    %881 = vst.msk [vmem:[#allocation3 + $0x10] sm:$0xff] %vm116, %v879
    %883 = vrot.lane.b32.xlu0 %v876, 64
    %v884 = vpop.permute.xlu0 %883
    %886 = vst.msk [vmem:[#allocation3 + $0x28] sm:$0xff] %vm489, %v884
    %v887 = vld [vmem:[#allocation2 + $0x30] sm:$0xff]
    %v888 = vsel %vm116, %v879, 0
    %890 = vmatprep.subr.mxu0 0.0
    %891 = vmatpush1.msra.mxu0 %v270
    %892 = vmatprep.subr.mxu0 0.0
    %893 = vmatpush1.msra.mxu0 %v271
    %894 = vmatprep.subr.mxu0 0.0
    %895 = vmatpush1.msra.mxu0 %v272
    %896 = vmatprep.subr.mxu0 0.0
    %897 = vmatpush1.msra.mxu0 %v273
    %898 = vmatprep.subr.mxu0 0.0
    %899 = vmatpush1.msra.mxu0 0.0
    %900 = vmatprep.subr.mxu0 0.0
    %901 = vmatpush1.msra.mxu0 0.0
    %902 = vmatprep.subr.mxu0 0.0
    %903 = vmatpush1.msra.mxu0 0.0
    %904 = vmatprep.subr.mxu0 0.0
    %905 = vmatpush1.msra.mxu0 0.0
    %906 = vmatprep.subr.mxu0 0.0
    %907 = vmatpush1.msra.mxu0 0.0
    %908 = vmatprep.subr.mxu0 0.0
    %909 = vmatpush1.msra.mxu0 0.0
    %910 = vmatprep.subr.mxu0 0.0
    %911 = vmatpush1.msra.mxu0 0.0
    %912 = vmatprep.subr.mxu0 0.0
    %913 = vmatpush1.msra.mxu0 0.0
    %914 = vmatprep.subr.mxu0 0.0
    %915 = vmatpush1.msra.mxu0 0.0
    %916 = vmatprep.subr.mxu0 0.0
    %917 = vmatpush1.msra.mxu0 0.0
    %918 = vmatprep.subr.mxu0 0.0
    %919 = vmatpush1.msra.mxu0 0.0
    %920 = vmatprep.subr.mxu0 0.0
    %921 = vmatpush1.msra.mxu0 0.0
    %922 = vmatprep.subr.mxu0 0.0
    %923 = vmatpush1.msra.mxu0 0.0
    %924 = vmatprep.subr.mxu0 0.0
    %925 = vmatpush1.msra.mxu0 0.0
    %926 = vmatprep.subr.mxu0 0.0
    %927 = vmatpush1.msra.mxu0 0.0
    %928 = vmatprep.subr.mxu0 0.0
    %929 = vmatpush1.msra.mxu0 0.0
    %930 = vmatprep.subr.mxu0 0.0
    %931 = vmatpush1.msra.mxu0 0.0
    %932 = vmatprep.subr.mxu0 0.0
    %933 = vmatpush1.msra.mxu0 0.0
    %934 = vmatprep.subr.mxu0 0.0
    %935 = vmatpush1.msra.mxu0 0.0
    %936 = vmatprep.subr.mxu0 0.0
    %937 = vmatpush1.msra.mxu0 0.0
    %938 = vmatprep.subr.mxu0 0.0
    %939 = vmatpush1.msra.mxu0 0.0
    %940 = vmatprep.subr.mxu0 0.0
    %941 = vmatpush1.msra.mxu0 0.0
    %942 = vmatprep.subr.mxu0 0.0
    %943 = vmatpush1.msra.mxu0 0.0
    %944 = vmatprep.subr.mxu0 0.0
    %945 = vmatpush1.msra.mxu0 0.0
    %946 = vmatprep.subr.mxu0 0.0
    %947 = vmatpush1.msra.mxu0 0.0
    %948 = vmatprep.subr.mxu0 0.0
    %949 = vmatpush1.msra.mxu0 0.0
    %950 = vmatprep.subr.mxu0 0.0
    %951 = vmatpush1.msra.mxu0 0.0
    %952 = vmatprep.subr.mxu0 0.0
    %953 = vmatpush1.msra.mxu0 0.0
    %954 = vmatprep.mubr.f32.mxu0 0.0
    %955 = vmatmul.mubr.f32.gmra.mrb[0].mxu0 %v888
    %v956 = vpop.f32.mrb[0].mxu0
    %v957 = vadd.f32 %v887, %v956
    %v958 = vpop.f32.mrb[0].mxu0
    %959 = vdwg.mxu0
    %v960 = vtanh.pop %v957
    %v961 = vmul.f32 %v960, 0.5
    %v962 = vadd.f32 %v961, 0.5
    %v963 = vmul.f32 %v962, %v775
    %965 = vrot.lane.b32.xlu0 %v960, 64
    %v966 = vpop.permute.xlu0 %965
    %v968 = vmul.f32 %v962, %v966
    %970 = vrot.lane.b32.xlu0 %v968, 32
    %v971 = vpop.permute.xlu0 %970
    %v973 = vadd.f32 %v963, %v971
    %v974 = vtanh.pop %v973
    %976 = vrot.lane.b32.xlu0 %v974, 64
    %v977 = vpop.permute.xlu0 %976
    %v979 = vmul.f32 %v962, %v977
    %v980 = vld [vmem:[#allocation2 + $0x48] sm:$0xff]
    %981 = vrot.lane.b32.xlu0 %v876, 32
    %v982 = vpop.permute.xlu0 %981
    %v983 = vsel %vm116, %v982, 0
    %985 = vmatprep.subr.mxu0 0.0
    %986 = vmatpush1.msra.mxu0 %v274
    %987 = vmatprep.subr.mxu0 0.0
    %988 = vmatpush1.msra.mxu0 %v275
    %989 = vmatprep.subr.mxu0 0.0
    %990 = vmatpush1.msra.mxu0 %v276
    %991 = vmatprep.subr.mxu0 0.0
    %992 = vmatpush1.msra.mxu0 %v277
    %993 = vmatprep.subr.mxu0 0.0
    %994 = vmatpush1.msra.mxu0 0.0
    %995 = vmatprep.subr.mxu0 0.0
    %996 = vmatpush1.msra.mxu0 0.0
    %997 = vmatprep.subr.mxu0 0.0
    %998 = vmatpush1.msra.mxu0 0.0
    %999 = vmatprep.subr.mxu0 0.0
    %1000 = vmatpush1.msra.mxu0 0.0
    %1001 = vmatprep.subr.mxu0 0.0
    %1002 = vmatpush1.msra.mxu0 0.0
    %1003 = vmatprep.subr.mxu0 0.0
    %1004 = vmatpush1.msra.mxu0 0.0
    %1005 = vmatprep.subr.mxu0 0.0
    %1006 = vmatpush1.msra.mxu0 0.0
    %1007 = vmatprep.subr.mxu0 0.0
    %1008 = vmatpush1.msra.mxu0 0.0
    %1009 = vmatprep.subr.mxu0 0.0
    %1010 = vmatpush1.msra.mxu0 0.0
    %1011 = vmatprep.subr.mxu0 0.0
    %1012 = vmatpush1.msra.mxu0 0.0
    %1013 = vmatprep.subr.mxu0 0.0
    %1014 = vmatpush1.msra.mxu0 0.0
    %1015 = vmatprep.subr.mxu0 0.0
    %1016 = vmatpush1.msra.mxu0 0.0
    %1017 = vmatprep.subr.mxu0 0.0
    %1018 = vmatpush1.msra.mxu0 0.0
    %1019 = vmatprep.subr.mxu0 0.0
    %1020 = vmatpush1.msra.mxu0 0.0
    %1021 = vmatprep.subr.mxu0 0.0
    %1022 = vmatpush1.msra.mxu0 0.0
    %1023 = vmatprep.subr.mxu0 0.0
    %1024 = vmatpush1.msra.mxu0 0.0
    %1025 = vmatprep.subr.mxu0 0.0
    %1026 = vmatpush1.msra.mxu0 0.0
    %1027 = vmatprep.subr.mxu0 0.0
    %1028 = vmatpush1.msra.mxu0 0.0
    %1029 = vmatprep.subr.mxu0 0.0
    %1030 = vmatpush1.msra.mxu0 0.0
    %1031 = vmatprep.subr.mxu0 0.0
    %1032 = vmatpush1.msra.mxu0 0.0
    %1033 = vmatprep.subr.mxu0 0.0
    %1034 = vmatpush1.msra.mxu0 0.0
    %1035 = vmatprep.subr.mxu0 0.0
    %1036 = vmatpush1.msra.mxu0 0.0
    %1037 = vmatprep.subr.mxu0 0.0
    %1038 = vmatpush1.msra.mxu0 0.0
    %1039 = vmatprep.subr.mxu0 0.0
    %1040 = vmatpush1.msra.mxu0 0.0
    %1041 = vmatprep.subr.mxu0 0.0
    %1042 = vmatpush1.msra.mxu0 0.0
    %1043 = vmatprep.subr.mxu0 0.0
    %1044 = vmatpush1.msra.mxu0 0.0
    %1045 = vmatprep.subr.mxu0 0.0
    %1046 = vmatpush1.msra.mxu0 0.0
    %1047 = vmatprep.subr.mxu0 0.0
    %1048 = vmatpush1.msra.mxu0 0.0
    %1049 = vmatprep.mubr.f32.mxu0 0.0
    %1050 = vmatmul.mubr.f32.gmra.mrb[0].mxu0 %v983
    %v1051 = vpop.f32.mrb[0].mxu0
    %v1052 = vadd.f32 %v980, %v1051
    %v1053 = vpop.f32.mrb[0].mxu0
    %1054 = vdwg.mxu0
    %v1055 = vtanh.pop %v1052
    %v1056 = vmul.f32 %v1055, 0.5
    %v1057 = vadd.f32 %v1056, 0.5
    %v1058 = vmul.f32 %v1057, %v870
    %1060 = vrot.lane.b32.xlu0 %v1055, 64
    %v1061 = vpop.permute.xlu0 %1060
    %v1063 = vmul.f32 %v1057, %v1061
    %1065 = vrot.lane.b32.xlu0 %v1063, 32
    %v1066 = vpop.permute.xlu0 %1065
    %v1068 = vadd.f32 %v1058, %v1066
    %v1069 = vtanh.pop %v1068
    %1071 = vrot.lane.b32.xlu0 %v1069, 64
    %v1072 = vpop.permute.xlu0 %1071
    %v1074 = vmul.f32 %v1057, %v1072
    %1076 = vrot.lane.b32.xlu0 %v979, 32
    %v1077 = vpop.permute.xlu0 %1076
    %1079 = vst.msk [vmem:[#allocation3 + $0x18] sm:$0xff] %vm116, %v1077
    %1081 = vrot.lane.b32.xlu0 %v1074, 64
    %v1082 = vpop.permute.xlu0 %1081
    %1084 = vst.msk [vmem:[#allocation3 + $0x20] sm:$0xff] %vm489, %v1082
    %v1085 = vld [vmem:[#allocation2 + $0x40] sm:$0xff]
    %v1086 = vsel %vm116, %v1077, 0
    %1088 = vmatprep.subr.mxu0 0.0
    %1089 = vmatpush1.msra.mxu0 %v270
    %1090 = vmatprep.subr.mxu0 0.0
    %1091 = vmatpush1.msra.mxu0 %v271
    %1092 = vmatprep.subr.mxu0 0.0
    %1093 = vmatpush1.msra.mxu0 %v272
    %1094 = vmatprep.subr.mxu0 0.0
    %1095 = vmatpush1.msra.mxu0 %v273
    %1096 = vmatprep.subr.mxu0 0.0
    %1097 = vmatpush1.msra.mxu0 0.0
    %1098 = vmatprep.subr.mxu0 0.0
    %1099 = vmatpush1.msra.mxu0 0.0
    %1100 = vmatprep.subr.mxu0 0.0
    %1101 = vmatpush1.msra.mxu0 0.0
    %1102 = vmatprep.subr.mxu0 0.0
    %1103 = vmatpush1.msra.mxu0 0.0
    %1104 = vmatprep.subr.mxu0 0.0
    %1105 = vmatpush1.msra.mxu0 0.0
    %1106 = vmatprep.subr.mxu0 0.0
    %1107 = vmatpush1.msra.mxu0 0.0
    %1108 = vmatprep.subr.mxu0 0.0
    %1109 = vmatpush1.msra.mxu0 0.0
    %1110 = vmatprep.subr.mxu0 0.0
    %1111 = vmatpush1.msra.mxu0 0.0
    %1112 = vmatprep.subr.mxu0 0.0
    %1113 = vmatpush1.msra.mxu0 0.0
    %1114 = vmatprep.subr.mxu0 0.0
    %1115 = vmatpush1.msra.mxu0 0.0
    %1116 = vmatprep.subr.mxu0 0.0
    %1117 = vmatpush1.msra.mxu0 0.0
    %1118 = vmatprep.subr.mxu0 0.0
    %1119 = vmatpush1.msra.mxu0 0.0
    %1120 = vmatprep.subr.mxu0 0.0
    %1121 = vmatpush1.msra.mxu0 0.0
    %1122 = vmatprep.subr.mxu0 0.0
    %1123 = vmatpush1.msra.mxu0 0.0
    %1124 = vmatprep.subr.mxu0 0.0
    %1125 = vmatpush1.msra.mxu0 0.0
    %1126 = vmatprep.subr.mxu0 0.0
    %1127 = vmatpush1.msra.mxu0 0.0
    %1128 = vmatprep.subr.mxu0 0.0
    %1129 = vmatpush1.msra.mxu0 0.0
    %1130 = vmatprep.subr.mxu0 0.0
    %1131 = vmatpush1.msra.mxu0 0.0
    %1132 = vmatprep.subr.mxu0 0.0
    %1133 = vmatpush1.msra.mxu0 0.0
    %1134 = vmatprep.subr.mxu0 0.0
    %1135 = vmatpush1.msra.mxu0 0.0
    %1136 = vmatprep.subr.mxu0 0.0
    %1137 = vmatpush1.msra.mxu0 0.0
    %1138 = vmatprep.subr.mxu0 0.0
    %1139 = vmatpush1.msra.mxu0 0.0
    %1140 = vmatprep.subr.mxu0 0.0
    %1141 = vmatpush1.msra.mxu0 0.0
    %1142 = vmatprep.subr.mxu0 0.0
    %1143 = vmatpush1.msra.mxu0 0.0
    %1144 = vmatprep.subr.mxu0 0.0
    %1145 = vmatpush1.msra.mxu0 0.0
    %1146 = vmatprep.subr.mxu0 0.0
    %1147 = vmatpush1.msra.mxu0 0.0
    %1148 = vmatprep.subr.mxu0 0.0
    %1149 = vmatpush1.msra.mxu0 0.0
    %1150 = vmatprep.subr.mxu0 0.0
    %1151 = vmatpush1.msra.mxu0 0.0
    %1152 = vmatprep.mubr.f32.mxu0 0.0
    %1153 = vmatmul.mubr.f32.gmra.mrb[0].mxu0 %v1086
    %v1154 = vpop.f32.mrb[0].mxu0
    %v1155 = vadd.f32 %v1085, %v1154
    %v1156 = vpop.f32.mrb[0].mxu0
    %1157 = vdwg.mxu0
    %v1158 = vtanh.pop %v1155
    %v1159 = vmul.f32 %v1158, 0.5
    %v1160 = vadd.f32 %v1159, 0.5
    %v1161 = vmul.f32 %v1160, %v973
    %1163 = vrot.lane.b32.xlu0 %v1158, 64
    %v1164 = vpop.permute.xlu0 %1163
    %v1166 = vmul.f32 %v1160, %v1164
    %1168 = vrot.lane.b32.xlu0 %v1166, 32
    %v1169 = vpop.permute.xlu0 %1168
    %v1171 = vadd.f32 %v1161, %v1169
    %v1172 = vtanh.pop %v1171
    %1174 = vrot.lane.b32.xlu0 %v1172, 64
    %v1175 = vpop.permute.xlu0 %1174
    %v1177 = vmul.f32 %v1160, %v1175
    %v1178 = vld [vmem:[#allocation2 + $0x38] sm:$0xff]
    %1179 = vrot.lane.b32.xlu0 %v1074, 32
    %v1180 = vpop.permute.xlu0 %1179
    %v1181 = vsel %vm116, %v1180, 0
    %1183 = vmatprep.subr.mxu0 0.0
    %1184 = vmatpush1.msra.mxu0 %v274
    %1185 = vmatprep.subr.mxu0 0.0
    %1186 = vmatpush1.msra.mxu0 %v275
    %1187 = vmatprep.subr.mxu0 0.0
    %1188 = vmatpush1.msra.mxu0 %v276
    %1189 = vmatprep.subr.mxu0 0.0
    %1190 = vmatpush1.msra.mxu0 %v277
    %1191 = vmatprep.subr.mxu0 0.0
    %1192 = vmatpush1.msra.mxu0 0.0
    %1193 = vmatprep.subr.mxu0 0.0
    %1194 = vmatpush1.msra.mxu0 0.0
    %1195 = vmatprep.subr.mxu0 0.0
    %1196 = vmatpush1.msra.mxu0 0.0
    %1197 = vmatprep.subr.mxu0 0.0
    %1198 = vmatpush1.msra.mxu0 0.0
    %1199 = vmatprep.subr.mxu0 0.0
    %1200 = vmatpush1.msra.mxu0 0.0
    %1201 = vmatprep.subr.mxu0 0.0
    %1202 = vmatpush1.msra.mxu0 0.0
    %1203 = vmatprep.subr.mxu0 0.0
    %1204 = vmatpush1.msra.mxu0 0.0
    %1205 = vmatprep.subr.mxu0 0.0
    %1206 = vmatpush1.msra.mxu0 0.0
    %1207 = vmatprep.subr.mxu0 0.0
    %1208 = vmatpush1.msra.mxu0 0.0
    %1209 = vmatprep.subr.mxu0 0.0
    %1210 = vmatpush1.msra.mxu0 0.0
    %1211 = vmatprep.subr.mxu0 0.0
    %1212 = vmatpush1.msra.mxu0 0.0
    %1213 = vmatprep.subr.mxu0 0.0
    %1214 = vmatpush1.msra.mxu0 0.0
    %1215 = vmatprep.subr.mxu0 0.0
    %1216 = vmatpush1.msra.mxu0 0.0
    %1217 = vmatprep.subr.mxu0 0.0
    %1218 = vmatpush1.msra.mxu0 0.0
    %1219 = vmatprep.subr.mxu0 0.0
    %1220 = vmatpush1.msra.mxu0 0.0
    %1221 = vmatprep.subr.mxu0 0.0
    %1222 = vmatpush1.msra.mxu0 0.0
    %1223 = vmatprep.subr.mxu0 0.0
    %1224 = vmatpush1.msra.mxu0 0.0
    %1225 = vmatprep.subr.mxu0 0.0
    %1226 = vmatpush1.msra.mxu0 0.0
    %1227 = vmatprep.subr.mxu0 0.0
    %1228 = vmatpush1.msra.mxu0 0.0
    %1229 = vmatprep.subr.mxu0 0.0
    %1230 = vmatpush1.msra.mxu0 0.0
    %1231 = vmatprep.subr.mxu0 0.0
    %1232 = vmatpush1.msra.mxu0 0.0
    %1233 = vmatprep.subr.mxu0 0.0
    %1234 = vmatpush1.msra.mxu0 0.0
    %1235 = vmatprep.subr.mxu0 0.0
    %1236 = vmatpush1.msra.mxu0 0.0
    %1237 = vmatprep.subr.mxu0 0.0
    %1238 = vmatpush1.msra.mxu0 0.0
    %1239 = vmatprep.subr.mxu0 0.0
    %1240 = vmatpush1.msra.mxu0 0.0
    %1241 = vmatprep.subr.mxu0 0.0
    %1242 = vmatpush1.msra.mxu0 0.0
    %1243 = vmatprep.subr.mxu0 0.0
    %1244 = vmatpush1.msra.mxu0 0.0
    %1245 = vmatprep.subr.mxu0 0.0
    %1246 = vmatpush1.msra.mxu0 0.0
    %1247 = vmatprep.mubr.f32.mxu0 0.0
    %1248 = vmatmul.mubr.f32.gmra.mrb[0].mxu0 %v1181
    %v1249 = vpop.f32.mrb[0].mxu0
    %v1250 = vadd.f32 %v1178, %v1249
    %v1251 = vpop.f32.mrb[0].mxu0
    %1252 = vdwg.mxu0
    %v1253 = vtanh.pop %v1250
    %v1254 = vmul.f32 %v1253, 0.5
    %v1255 = vadd.f32 %v1254, 0.5
    %v1256 = vmul.f32 %v1255, %v1068
    %1258 = vrot.lane.b32.xlu0 %v1253, 64
    %v1259 = vpop.permute.xlu0 %1258
    %v1261 = vmul.f32 %v1255, %v1259
    %1263 = vrot.lane.b32.xlu0 %v1261, 32
    %v1264 = vpop.permute.xlu0 %1263
    %v1266 = vadd.f32 %v1256, %v1264
    %v1267 = vtanh.pop %v1266
    %1269 = vrot.lane.b32.xlu0 %v1267, 64
    %v1270 = vpop.permute.xlu0 %1269
    %v1272 = vmul.f32 %v1255, %v1270
    %1274 = vrot.lane.b32.xlu0 %v1177, 32
    %v1275 = vpop.permute.xlu0 %1274
    %1277 = vst.msk [vmem:[#allocation3 + $0x20] sm:$0xff] %vm116, %v1275
    %1279 = vrot.lane.b32.xlu0 %v1272, 64
    %v1280 = vpop.permute.xlu0 %1279
    %1282 = vst.msk [vmem:[#allocation3 + $0x18] sm:$0xff] %vm489, %v1280
    %v1283 = vld [vmem:[#allocation2 + $0x50] sm:$0xff]
    %v1284 = vsel %vm116, %v1275, 0
    %1286 = vmatprep.subr.mxu0 0.0
    %1287 = vmatpush1.msra.mxu0 %v270
    %1288 = vmatprep.subr.mxu0 0.0
    %1289 = vmatpush1.msra.mxu0 %v271
    %1290 = vmatprep.subr.mxu0 0.0
    %1291 = vmatpush1.msra.mxu0 %v272
    %1292 = vmatprep.subr.mxu0 0.0
    %1293 = vmatpush1.msra.mxu0 %v273
    %1294 = vmatprep.subr.mxu0 0.0
    %1295 = vmatpush1.msra.mxu0 0.0
    %1296 = vmatprep.subr.mxu0 0.0
    %1297 = vmatpush1.msra.mxu0 0.0
    %1298 = vmatprep.subr.mxu0 0.0
    %1299 = vmatpush1.msra.mxu0 0.0
    %1300 = vmatprep.subr.mxu0 0.0
    %1301 = vmatpush1.msra.mxu0 0.0
    %1302 = vmatprep.subr.mxu0 0.0
    %1303 = vmatpush1.msra.mxu0 0.0
    %1304 = vmatprep.subr.mxu0 0.0
    %1305 = vmatpush1.msra.mxu0 0.0
    %1306 = vmatprep.subr.mxu0 0.0
    %1307 = vmatpush1.msra.mxu0 0.0
    %1308 = vmatprep.subr.mxu0 0.0
    %1309 = vmatpush1.msra.mxu0 0.0
    %1310 = vmatprep.subr.mxu0 0.0
    %1311 = vmatpush1.msra.mxu0 0.0
    %1312 = vmatprep.subr.mxu0 0.0
    %1313 = vmatpush1.msra.mxu0 0.0
    %1314 = vmatprep.subr.mxu0 0.0
    %1315 = vmatpush1.msra.mxu0 0.0
    %1316 = vmatprep.subr.mxu0 0.0
    %1317 = vmatpush1.msra.mxu0 0.0
    %1318 = vmatprep.subr.mxu0 0.0
    %1319 = vmatpush1.msra.mxu0 0.0
    %1320 = vmatprep.subr.mxu0 0.0
    %1321 = vmatpush1.msra.mxu0 0.0
    %1322 = vmatprep.subr.mxu0 0.0
    %1323 = vmatpush1.msra.mxu0 0.0
    %1324 = vmatprep.subr.mxu0 0.0
    %1325 = vmatpush1.msra.mxu0 0.0
    %1326 = vmatprep.subr.mxu0 0.0
    %1327 = vmatpush1.msra.mxu0 0.0
    %1328 = vmatprep.subr.mxu0 0.0
    %1329 = vmatpush1.msra.mxu0 0.0
    %1330 = vmatprep.subr.mxu0 0.0
    %1331 = vmatpush1.msra.mxu0 0.0
    %1332 = vmatprep.subr.mxu0 0.0
    %1333 = vmatpush1.msra.mxu0 0.0
    %1334 = vmatprep.subr.mxu0 0.0
    %1335 = vmatpush1.msra.mxu0 0.0
    %1336 = vmatprep.subr.mxu0 0.0
    %1337 = vmatpush1.msra.mxu0 0.0
    %1338 = vmatprep.subr.mxu0 0.0
    %1339 = vmatpush1.msra.mxu0 0.0
    %1340 = vmatprep.subr.mxu0 0.0
    %1341 = vmatpush1.msra.mxu0 0.0
    %1342 = vmatprep.subr.mxu0 0.0
    %1343 = vmatpush1.msra.mxu0 0.0
    %1344 = vmatprep.subr.mxu0 0.0
    %1345 = vmatpush1.msra.mxu0 0.0
    %1346 = vmatprep.subr.mxu0 0.0
    %1347 = vmatpush1.msra.mxu0 0.0
    %1348 = vmatprep.subr.mxu0 0.0
    %1349 = vmatpush1.msra.mxu0 0.0
    %1350 = vmatprep.mubr.f32.mxu0 0.0
    %1351 = vmatmul.mubr.f32.gmra.mrb[0].mxu0 %v1284
    %v1352 = vpop.f32.mrb[0].mxu0
    %v1353 = vadd.f32 %v1283, %v1352
    %v1354 = vpop.f32.mrb[0].mxu0
    %1355 = vdwg.mxu0
    %v1356 = vtanh.pop %v1353
    %v1357 = vmul.f32 %v1356, 0.5
    %v1358 = vadd.f32 %v1357, 0.5
    %v1359 = vmul.f32 %v1358, %v1171
    %1361 = vrot.lane.b32.xlu0 %v1356, 64
    %v1362 = vpop.permute.xlu0 %1361
    %v1364 = vmul.f32 %v1358, %v1362
    %1366 = vrot.lane.b32.xlu0 %v1364, 32
    %v1367 = vpop.permute.xlu0 %1366
    %v1369 = vadd.f32 %v1359, %v1367
    %v1370 = vtanh.pop %v1369
    %1372 = vrot.lane.b32.xlu0 %v1370, 64
    %v1373 = vpop.permute.xlu0 %1372
    %v1375 = vmul.f32 %v1358, %v1373
    %v1376 = vld [vmem:[#allocation2 + $0x28] sm:$0xff]
    %1377 = vrot.lane.b32.xlu0 %v1272, 32
    %v1378 = vpop.permute.xlu0 %1377
    %v1379 = vsel %vm116, %v1378, 0
    %1381 = vmatprep.subr.mxu0 0.0
    %1382 = vmatpush1.msra.mxu0 %v274
    %1383 = vmatprep.subr.mxu0 0.0
    %1384 = vmatpush1.msra.mxu0 %v275
    %1385 = vmatprep.subr.mxu0 0.0
    %1386 = vmatpush1.msra.mxu0 %v276
    %1387 = vmatprep.subr.mxu0 0.0
    %1388 = vmatpush1.msra.mxu0 %v277
    %1389 = vmatprep.subr.mxu0 0.0
    %1390 = vmatpush1.msra.mxu0 0.0
    %1391 = vmatprep.subr.mxu0 0.0
    %1392 = vmatpush1.msra.mxu0 0.0
    %1393 = vmatprep.subr.mxu0 0.0
    %1394 = vmatpush1.msra.mxu0 0.0
    %1395 = vmatprep.subr.mxu0 0.0
    %1396 = vmatpush1.msra.mxu0 0.0
    %1397 = vmatprep.subr.mxu0 0.0
    %1398 = vmatpush1.msra.mxu0 0.0
    %1399 = vmatprep.subr.mxu0 0.0
    %1400 = vmatpush1.msra.mxu0 0.0
    %1401 = vmatprep.subr.mxu0 0.0
    %1402 = vmatpush1.msra.mxu0 0.0
    %1403 = vmatprep.subr.mxu0 0.0
    %1404 = vmatpush1.msra.mxu0 0.0
    %1405 = vmatprep.subr.mxu0 0.0
    %1406 = vmatpush1.msra.mxu0 0.0
    %1407 = vmatprep.subr.mxu0 0.0
    %1408 = vmatpush1.msra.mxu0 0.0
    %1409 = vmatprep.subr.mxu0 0.0
    %1410 = vmatpush1.msra.mxu0 0.0
    %1411 = vmatprep.subr.mxu0 0.0
    %1412 = vmatpush1.msra.mxu0 0.0
    %1413 = vmatprep.subr.mxu0 0.0
    %1414 = vmatpush1.msra.mxu0 0.0
    %1415 = vmatprep.subr.mxu0 0.0
    %1416 = vmatpush1.msra.mxu0 0.0
    %1417 = vmatprep.subr.mxu0 0.0
    %1418 = vmatpush1.msra.mxu0 0.0
    %1419 = vmatprep.subr.mxu0 0.0
    %1420 = vmatpush1.msra.mxu0 0.0
    %1421 = vmatprep.subr.mxu0 0.0
    %1422 = vmatpush1.msra.mxu0 0.0
    %1423 = vmatprep.subr.mxu0 0.0
    %1424 = vmatpush1.msra.mxu0 0.0
    %1425 = vmatprep.subr.mxu0 0.0
    %1426 = vmatpush1.msra.mxu0 0.0
    %1427 = vmatprep.subr.mxu0 0.0
    %1428 = vmatpush1.msra.mxu0 0.0
    %1429 = vmatprep.subr.mxu0 0.0
    %1430 = vmatpush1.msra.mxu0 0.0
    %1431 = vmatprep.subr.mxu0 0.0
    %1432 = vmatpush1.msra.mxu0 0.0
    %1433 = vmatprep.subr.mxu0 0.0
    %1434 = vmatpush1.msra.mxu0 0.0
    %1435 = vmatprep.subr.mxu0 0.0
    %1436 = vmatpush1.msra.mxu0 0.0
    %1437 = vmatprep.subr.mxu0 0.0
    %1438 = vmatpush1.msra.mxu0 0.0
    %1439 = vmatprep.subr.mxu0 0.0
    %1440 = vmatpush1.msra.mxu0 0.0
    %1441 = vmatprep.subr.mxu0 0.0
    %1442 = vmatpush1.msra.mxu0 0.0
    %1443 = vmatprep.subr.mxu0 0.0
    %1444 = vmatpush1.msra.mxu0 0.0
    %1445 = vmatprep.mubr.f32.mxu0 0.0
    %1446 = vmatmul.mubr.f32.gmra.mrb[0].mxu0 %v1379
    %v1447 = vpop.f32.mrb[0].mxu0
    %v1448 = vadd.f32 %v1376, %v1447
    %v1449 = vpop.f32.mrb[0].mxu0
    %1450 = vdwg.mxu0
    %v1451 = vtanh.pop %v1448
    %v1452 = vmul.f32 %v1451, 0.5
    %v1453 = vadd.f32 %v1452, 0.5
    %v1454 = vmul.f32 %v1453, %v1266
    %1456 = vrot.lane.b32.xlu0 %v1451, 64
    %v1457 = vpop.permute.xlu0 %1456
    %v1459 = vmul.f32 %v1453, %v1457
    %1461 = vrot.lane.b32.xlu0 %v1459, 32
    %v1462 = vpop.permute.xlu0 %1461
    %v1464 = vadd.f32 %v1454, %v1462
    %v1465 = vtanh.pop %v1464
    %1467 = vrot.lane.b32.xlu0 %v1465, 64
    %v1468 = vpop.permute.xlu0 %1467
    %v1470 = vmul.f32 %v1453, %v1468
    %1472 = vrot.lane.b32.xlu0 %v1375, 32
    %v1473 = vpop.permute.xlu0 %1472
    %1475 = vst.msk [vmem:[#allocation3 + $0x28] sm:$0xff] %vm116, %v1473
    %1477 = vrot.lane.b32.xlu0 %v1470, 64
    %v1478 = vpop.permute.xlu0 %1477
    %1480 = vst.msk [vmem:[#allocation3 + $0x10] sm:$0xff] %vm489, %v1478
    %v1481 = vld [vmem:[#allocation2 + $0x60] sm:$0xff]
    %v1482 = vsel %vm116, %v1473, 0
    %1484 = vmatprep.subr.mxu0 0.0
    %1485 = vmatpush1.msra.mxu0 %v270
    %1486 = vmatprep.subr.mxu0 0.0
    %1487 = vmatpush1.msra.mxu0 %v271
    %1488 = vmatprep.subr.mxu0 0.0
    %1489 = vmatpush1.msra.mxu0 %v272
    %1490 = vmatprep.subr.mxu0 0.0
    %1491 = vmatpush1.msra.mxu0 %v273
    %1492 = vmatprep.subr.mxu0 0.0
    %1493 = vmatpush1.msra.mxu0 0.0
    %1494 = vmatprep.subr.mxu0 0.0
    %1495 = vmatpush1.msra.mxu0 0.0
    %1496 = vmatprep.subr.mxu0 0.0
    %1497 = vmatpush1.msra.mxu0 0.0
    %1498 = vmatprep.subr.mxu0 0.0
    %1499 = vmatpush1.msra.mxu0 0.0
    %1500 = vmatprep.subr.mxu0 0.0
    %1501 = vmatpush1.msra.mxu0 0.0
    %1502 = vmatprep.subr.mxu0 0.0
    %1503 = vmatpush1.msra.mxu0 0.0
    %1504 = vmatprep.subr.mxu0 0.0
    %1505 = vmatpush1.msra.mxu0 0.0
    %1506 = vmatprep.subr.mxu0 0.0
    %1507 = vmatpush1.msra.mxu0 0.0
    %1508 = vmatprep.subr.mxu0 0.0
    %1509 = vmatpush1.msra.mxu0 0.0
    %1510 = vmatprep.subr.mxu0 0.0
    %1511 = vmatpush1.msra.mxu0 0.0
    %1512 = vmatprep.subr.mxu0 0.0
    %1513 = vmatpush1.msra.mxu0 0.0
    %1514 = vmatprep.subr.mxu0 0.0
    %1515 = vmatpush1.msra.mxu0 0.0
    %1516 = vmatprep.subr.mxu0 0.0
    %1517 = vmatpush1.msra.mxu0 0.0
    %1518 = vmatprep.subr.mxu0 0.0
    %1519 = vmatpush1.msra.mxu0 0.0
    %1520 = vmatprep.subr.mxu0 0.0
    %1521 = vmatpush1.msra.mxu0 0.0
    %1522 = vmatprep.subr.mxu0 0.0
    %1523 = vmatpush1.msra.mxu0 0.0
    %1524 = vmatprep.subr.mxu0 0.0
    %1525 = vmatpush1.msra.mxu0 0.0
    %1526 = vmatprep.subr.mxu0 0.0
    %1527 = vmatpush1.msra.mxu0 0.0
    %1528 = vmatprep.subr.mxu0 0.0
    %1529 = vmatpush1.msra.mxu0 0.0
    %1530 = vmatprep.subr.mxu0 0.0
    %1531 = vmatpush1.msra.mxu0 0.0
    %1532 = vmatprep.subr.mxu0 0.0
    %1533 = vmatpush1.msra.mxu0 0.0
    %1534 = vmatprep.subr.mxu0 0.0
    %1535 = vmatpush1.msra.mxu0 0.0
    %1536 = vmatprep.subr.mxu0 0.0
    %1537 = vmatpush1.msra.mxu0 0.0
    %1538 = vmatprep.subr.mxu0 0.0
    %1539 = vmatpush1.msra.mxu0 0.0
    %1540 = vmatprep.subr.mxu0 0.0
    %1541 = vmatpush1.msra.mxu0 0.0
    %1542 = vmatprep.subr.mxu0 0.0
    %1543 = vmatpush1.msra.mxu0 0.0
    %1544 = vmatprep.subr.mxu0 0.0
    %1545 = vmatpush1.msra.mxu0 0.0
    %1546 = vmatprep.subr.mxu0 0.0
    %1547 = vmatpush1.msra.mxu0 0.0
    %1548 = vmatprep.mubr.f32.mxu0 0.0
    %1549 = vmatmul.mubr.f32.gmra.mrb[0].mxu0 %v1482
    %v1550 = vpop.f32.mrb[0].mxu0
    %v1551 = vadd.f32 %v1481, %v1550
    %v1552 = vpop.f32.mrb[0].mxu0
    %1553 = vdwg.mxu0
    %v1554 = vtanh.pop %v1551
    %v1555 = vmul.f32 %v1554, 0.5
    %v1556 = vadd.f32 %v1555, 0.5
    %v1557 = vmul.f32 %v1556, %v1369
    %1559 = vrot.lane.b32.xlu0 %v1554, 64
    %v1560 = vpop.permute.xlu0 %1559
    %v1562 = vmul.f32 %v1556, %v1560
    %1564 = vrot.lane.b32.xlu0 %v1562, 32
    %v1565 = vpop.permute.xlu0 %1564
    %v1567 = vadd.f32 %v1557, %v1565
    %v1568 = vtanh.pop %v1567
    %1570 = vrot.lane.b32.xlu0 %v1568, 64
    %v1571 = vpop.permute.xlu0 %1570
    %v1573 = vmul.f32 %v1556, %v1571
    %v1574 = vld [vmem:[#allocation2 + $0x18] sm:$0xff]
    %1575 = vrot.lane.b32.xlu0 %v1470, 32
    %v1576 = vpop.permute.xlu0 %1575
    %v1577 = vsel %vm116, %v1576, 0
    %1579 = vmatprep.subr.mxu0 0.0
    %1580 = vmatpush1.msra.mxu0 %v274
    %1581 = vmatprep.subr.mxu0 0.0
    %1582 = vmatpush1.msra.mxu0 %v275
    %1583 = vmatprep.subr.mxu0 0.0
    %1584 = vmatpush1.msra.mxu0 %v276
    %1585 = vmatprep.subr.mxu0 0.0
    %1586 = vmatpush1.msra.mxu0 %v277
    %1587 = vmatprep.subr.mxu0 0.0
    %1588 = vmatpush1.msra.mxu0 0.0
    %1589 = vmatprep.subr.mxu0 0.0
    %1590 = vmatpush1.msra.mxu0 0.0
    %1591 = vmatprep.subr.mxu0 0.0
    %1592 = vmatpush1.msra.mxu0 0.0
    %1593 = vmatprep.subr.mxu0 0.0
    %1594 = vmatpush1.msra.mxu0 0.0
    %1595 = vmatprep.subr.mxu0 0.0
    %1596 = vmatpush1.msra.mxu0 0.0
    %1597 = vmatprep.subr.mxu0 0.0
    %1598 = vmatpush1.msra.mxu0 0.0
    %1599 = vmatprep.subr.mxu0 0.0
    %1600 = vmatpush1.msra.mxu0 0.0
    %1601 = vmatprep.subr.mxu0 0.0
    %1602 = vmatpush1.msra.mxu0 0.0
    %1603 = vmatprep.subr.mxu0 0.0
    %1604 = vmatpush1.msra.mxu0 0.0
    %1605 = vmatprep.subr.mxu0 0.0
    %1606 = vmatpush1.msra.mxu0 0.0
    %1607 = vmatprep.subr.mxu0 0.0
    %1608 = vmatpush1.msra.mxu0 0.0
    %1609 = vmatprep.subr.mxu0 0.0
    %1610 = vmatpush1.msra.mxu0 0.0
    %1611 = vmatprep.subr.mxu0 0.0
    %1612 = vmatpush1.msra.mxu0 0.0
    %1613 = vmatprep.subr.mxu0 0.0
    %1614 = vmatpush1.msra.mxu0 0.0
    %1615 = vmatprep.subr.mxu0 0.0
    %1616 = vmatpush1.msra.mxu0 0.0
    %1617 = vmatprep.subr.mxu0 0.0
    %1618 = vmatpush1.msra.mxu0 0.0
    %1619 = vmatprep.subr.mxu0 0.0
    %1620 = vmatpush1.msra.mxu0 0.0
    %1621 = vmatprep.subr.mxu0 0.0
    %1622 = vmatpush1.msra.mxu0 0.0
    %1623 = vmatprep.subr.mxu0 0.0
    %1624 = vmatpush1.msra.mxu0 0.0
    %1625 = vmatprep.subr.mxu0 0.0
    %1626 = vmatpush1.msra.mxu0 0.0
    %1627 = vmatprep.subr.mxu0 0.0
    %1628 = vmatpush1.msra.mxu0 0.0
    %1629 = vmatprep.subr.mxu0 0.0
    %1630 = vmatpush1.msra.mxu0 0.0
    %1631 = vmatprep.subr.mxu0 0.0
    %1632 = vmatpush1.msra.mxu0 0.0
    %1633 = vmatprep.subr.mxu0 0.0
    %1634 = vmatpush1.msra.mxu0 0.0
    %1635 = vmatprep.subr.mxu0 0.0
    %1636 = vmatpush1.msra.mxu0 0.0
    %1637 = vmatprep.subr.mxu0 0.0
    %1638 = vmatpush1.msra.mxu0 0.0
    %1639 = vmatprep.subr.mxu0 0.0
    %1640 = vmatpush1.msra.mxu0 0.0
    %1641 = vmatprep.subr.mxu0 0.0
    %1642 = vmatpush1.msra.mxu0 0.0
    %1643 = vmatprep.mubr.f32.mxu0 0.0
    %1644 = vmatmul.mubr.f32.gmra.mrb[0].mxu0 %v1577
    %v1645 = vpop.f32.mrb[0].mxu0
    %v1646 = vadd.f32 %v1574, %v1645
    %v1647 = vpop.f32.mrb[0].mxu0
    %1648 = vdwg.mxu0
    %v1649 = vtanh.pop %v1646
    %v1650 = vmul.f32 %v1649, 0.5
    %v1651 = vadd.f32 %v1650, 0.5
    %v1652 = vmul.f32 %v1651, %v1464
    %1654 = vrot.lane.b32.xlu0 %v1649, 64
    %v1655 = vpop.permute.xlu0 %1654
    %v1657 = vmul.f32 %v1651, %v1655
    %1659 = vrot.lane.b32.xlu0 %v1657, 32
    %v1660 = vpop.permute.xlu0 %1659
    %v1662 = vadd.f32 %v1652, %v1660
    %v1663 = vtanh.pop %v1662
    %1665 = vrot.lane.b32.xlu0 %v1663, 64
    %v1666 = vpop.permute.xlu0 %1665
    %v1668 = vmul.f32 %v1651, %v1666
    %1670 = vrot.lane.b32.xlu0 %v1573, 32
    %v1671 = vpop.permute.xlu0 %1670
    %1673 = vst.msk [vmem:[#allocation3 + $0x30] sm:$0xff] %vm116, %v1671
    %1675 = vrot.lane.b32.xlu0 %v1668, 64
    %v1676 = vpop.permute.xlu0 %1675
    %1678 = vst.msk [vmem:[#allocation3 + $0x8] sm:$0xff] %vm489, %v1676
    %v1679 = vld [vmem:[#allocation2 + $0x70] sm:$0xff]
    %v1680 = vsel %vm116, %v1671, 0
    %1682 = vmatprep.subr.mxu0 0.0
    %1683 = vmatpush1.msra.mxu0 %v270
    %1684 = vmatprep.subr.mxu0 0.0
    %1685 = vmatpush1.msra.mxu0 %v271
    %1686 = vmatprep.subr.mxu0 0.0
    %1687 = vmatpush1.msra.mxu0 %v272
    %1688 = vmatprep.subr.mxu0 0.0
    %1689 = vmatpush1.msra.mxu0 %v273
    %1690 = vmatprep.subr.mxu0 0.0
    %1691 = vmatpush1.msra.mxu0 0.0
    %1692 = vmatprep.subr.mxu0 0.0
    %1693 = vmatpush1.msra.mxu0 0.0
    %1694 = vmatprep.subr.mxu0 0.0
    %1695 = vmatpush1.msra.mxu0 0.0
    %1696 = vmatprep.subr.mxu0 0.0
    %1697 = vmatpush1.msra.mxu0 0.0
    %1698 = vmatprep.subr.mxu0 0.0
    %1699 = vmatpush1.msra.mxu0 0.0
    %1700 = vmatprep.subr.mxu0 0.0
    %1701 = vmatpush1.msra.mxu0 0.0
    %1702 = vmatprep.subr.mxu0 0.0
    %1703 = vmatpush1.msra.mxu0 0.0
    %1704 = vmatprep.subr.mxu0 0.0
    %1705 = vmatpush1.msra.mxu0 0.0
    %1706 = vmatprep.subr.mxu0 0.0
    %1707 = vmatpush1.msra.mxu0 0.0
    %1708 = vmatprep.subr.mxu0 0.0
    %1709 = vmatpush1.msra.mxu0 0.0
    %1710 = vmatprep.subr.mxu0 0.0
    %1711 = vmatpush1.msra.mxu0 0.0
    %1712 = vmatprep.subr.mxu0 0.0
    %1713 = vmatpush1.msra.mxu0 0.0
    %1714 = vmatprep.subr.mxu0 0.0
    %1715 = vmatpush1.msra.mxu0 0.0
    %1716 = vmatprep.subr.mxu0 0.0
    %1717 = vmatpush1.msra.mxu0 0.0
    %1718 = vmatprep.subr.mxu0 0.0
    %1719 = vmatpush1.msra.mxu0 0.0
    %1720 = vmatprep.subr.mxu0 0.0
    %1721 = vmatpush1.msra.mxu0 0.0
    %1722 = vmatprep.subr.mxu0 0.0
    %1723 = vmatpush1.msra.mxu0 0.0
    %1724 = vmatprep.subr.mxu0 0.0
    %1725 = vmatpush1.msra.mxu0 0.0
    %1726 = vmatprep.subr.mxu0 0.0
    %1727 = vmatpush1.msra.mxu0 0.0
    %1728 = vmatprep.subr.mxu0 0.0
    %1729 = vmatpush1.msra.mxu0 0.0
    %1730 = vmatprep.subr.mxu0 0.0
    %1731 = vmatpush1.msra.mxu0 0.0
    %1732 = vmatprep.subr.mxu0 0.0
    %1733 = vmatpush1.msra.mxu0 0.0
    %1734 = vmatprep.subr.mxu0 0.0
    %1735 = vmatpush1.msra.mxu0 0.0
    %1736 = vmatprep.subr.mxu0 0.0
    %1737 = vmatpush1.msra.mxu0 0.0
    %1738 = vmatprep.subr.mxu0 0.0
    %1739 = vmatpush1.msra.mxu0 0.0
    %1740 = vmatprep.subr.mxu0 0.0
    %1741 = vmatpush1.msra.mxu0 0.0
    %1742 = vmatprep.subr.mxu0 0.0
    %1743 = vmatpush1.msra.mxu0 0.0
    %1744 = vmatprep.subr.mxu0 0.0
    %1745 = vmatpush1.msra.mxu0 0.0
    %1746 = vmatprep.mubr.f32.mxu0 0.0
    %1747 = vmatmul.mubr.f32.gmra.mrb[0].mxu0 %v1680
    %v1748 = vpop.f32.mrb[0].mxu0
    %v1749 = vadd.f32 %v1679, %v1748
    %v1750 = vpop.f32.mrb[0].mxu0
    %1751 = vdwg.mxu0
    %v1752 = vtanh.pop %v1749
    %v1753 = vmul.f32 %v1752, 0.5
    %v1754 = vadd.f32 %v1753, 0.5
    %v1755 = vmul.f32 %v1754, %v1567
    %1757 = vrot.lane.b32.xlu0 %v1752, 64
    %v1758 = vpop.permute.xlu0 %1757
    %v1760 = vmul.f32 %v1754, %v1758
    %1762 = vrot.lane.b32.xlu0 %v1760, 32
    %v1763 = vpop.permute.xlu0 %1762
    %v1765 = vadd.f32 %v1755, %v1763
    %v1766 = vtanh.pop %v1765
    %1768 = vrot.lane.b32.xlu0 %v1766, 64
    %v1769 = vpop.permute.xlu0 %1768
    %v1771 = vmul.f32 %v1754, %v1769
    %v1772 = vld [vmem:[#allocation2 + $0x8] sm:$0xff]
    %1773 = vrot.lane.b32.xlu0 %v1668, 32
    %v1774 = vpop.permute.xlu0 %1773
    %v1775 = vsel %vm116, %v1774, 0
    %1777 = vmatprep.subr.mxu0 0.0
    %1778 = vmatpush1.msra.mxu0 %v274
    %1779 = vmatprep.subr.mxu0 0.0
    %1780 = vmatpush1.msra.mxu0 %v275
    %1781 = vmatprep.subr.mxu0 0.0
    %1782 = vmatpush1.msra.mxu0 %v276
    %1783 = vmatprep.subr.mxu0 0.0
    %1784 = vmatpush1.msra.mxu0 %v277
    %1785 = vmatprep.subr.mxu0 0.0
    %1786 = vmatpush1.msra.mxu0 0.0
    %1787 = vmatprep.subr.mxu0 0.0
    %1788 = vmatpush1.msra.mxu0 0.0
    %1789 = vmatprep.subr.mxu0 0.0
    %1790 = vmatpush1.msra.mxu0 0.0
    %1791 = vmatprep.subr.mxu0 0.0
    %1792 = vmatpush1.msra.mxu0 0.0
    %1793 = vmatprep.subr.mxu0 0.0
    %1794 = vmatpush1.msra.mxu0 0.0
    %1795 = vmatprep.subr.mxu0 0.0
    %1796 = vmatpush1.msra.mxu0 0.0
    %1797 = vmatprep.subr.mxu0 0.0
    %1798 = vmatpush1.msra.mxu0 0.0
    %1799 = vmatprep.subr.mxu0 0.0
    %1800 = vmatpush1.msra.mxu0 0.0
    %1801 = vmatprep.subr.mxu0 0.0
    %1802 = vmatpush1.msra.mxu0 0.0
    %1803 = vmatprep.subr.mxu0 0.0
    %1804 = vmatpush1.msra.mxu0 0.0
    %1805 = vmatprep.subr.mxu0 0.0
    %1806 = vmatpush1.msra.mxu0 0.0
    %1807 = vmatprep.subr.mxu0 0.0
    %1808 = vmatpush1.msra.mxu0 0.0
    %1809 = vmatprep.subr.mxu0 0.0
    %1810 = vmatpush1.msra.mxu0 0.0
    %1811 = vmatprep.subr.mxu0 0.0
    %1812 = vmatpush1.msra.mxu0 0.0
    %1813 = vmatprep.subr.mxu0 0.0
    %1814 = vmatpush1.msra.mxu0 0.0
    %1815 = vmatprep.subr.mxu0 0.0
    %1816 = vmatpush1.msra.mxu0 0.0
    %1817 = vmatprep.subr.mxu0 0.0
    %1818 = vmatpush1.msra.mxu0 0.0
    %1819 = vmatprep.subr.mxu0 0.0
    %1820 = vmatpush1.msra.mxu0 0.0
    %1821 = vmatprep.subr.mxu0 0.0
    %1822 = vmatpush1.msra.mxu0 0.0
    %1823 = vmatprep.subr.mxu0 0.0
    %1824 = vmatpush1.msra.mxu0 0.0
    %1825 = vmatprep.subr.mxu0 0.0
    %1826 = vmatpush1.msra.mxu0 0.0
    %1827 = vmatprep.subr.mxu0 0.0
    %1828 = vmatpush1.msra.mxu0 0.0
    %1829 = vmatprep.subr.mxu0 0.0
    %1830 = vmatpush1.msra.mxu0 0.0
    %1831 = vmatprep.subr.mxu0 0.0
    %1832 = vmatpush1.msra.mxu0 0.0
    %1833 = vmatprep.subr.mxu0 0.0
    %1834 = vmatpush1.msra.mxu0 0.0
    %1835 = vmatprep.subr.mxu0 0.0
    %1836 = vmatpush1.msra.mxu0 0.0
    %1837 = vmatprep.subr.mxu0 0.0
    %1838 = vmatpush1.msra.mxu0 0.0
    %1839 = vmatprep.subr.mxu0 0.0
    %1840 = vmatpush1.msra.mxu0 0.0
    %1841 = vmatprep.mubr.f32.mxu0 0.0
    %1842 = vmatmul.mubr.f32.gmra.mrb[0].mxu0 %v1775
    %v1843 = vpop.f32.mrb[0].mxu0
    %v1844 = vadd.f32 %v1772, %v1843
    %v1845 = vpop.f32.mrb[0].mxu0
    %1846 = vdwg.mxu0
    %v1847 = vtanh.pop %v1844
    %v1848 = vmul.f32 %v1847, 0.5
    %v1849 = vadd.f32 %v1848, 0.5
    %v1850 = vmul.f32 %v1849, %v1662
    %1852 = vrot.lane.b32.xlu0 %v1847, 64
    %v1853 = vpop.permute.xlu0 %1852
    %v1855 = vmul.f32 %v1849, %v1853
    %1857 = vrot.lane.b32.xlu0 %v1855, 32
    %v1858 = vpop.permute.xlu0 %1857
    %v1860 = vadd.f32 %v1850, %v1858
    %v1861 = vtanh.pop %v1860
    %1863 = vrot.lane.b32.xlu0 %v1861, 64
    %v1864 = vpop.permute.xlu0 %1863
    %v1866 = vmul.f32 %v1849, %v1864
    %1868 = vrot.lane.b32.xlu0 %v1771, 32
    %v1869 = vpop.permute.xlu0 %1868
    %1871 = vst.msk [vmem:[#allocation3 + $0x38] sm:$0xff] %vm116, %v1869
    %1873 = vrot.lane.b32.xlu0 %v1866, 64
    %v1874 = vpop.permute.xlu0 %1873
    %1876 = vst.msk [vmem:[#allocation3] sm:$0xff] %vm489, %v1874
    %v1877 = vld [vmem:[#allocation3] sm:$0xff]
    %v1878 = vld [vmem:[#allocation3 + $0x8] sm:$0xff]
    %v1879 = vld [vmem:[#allocation3 + $0x10] sm:$0xff]
    %v1880 = vld [vmem:[#allocation3 + $0x18] sm:$0xff]
    %v1881 = vld [vmem:[#allocation3 + $0x20] sm:$0xff]
    %v1882 = vld [vmem:[#allocation3 + $0x28] sm:$0xff]
    %v1883 = vld [vmem:[#allocation3 + $0x30] sm:$0xff]
    %v1884 = vld [vmem:[#allocation3 + $0x38] sm:$0xff]
    %v1885 = vld [vmem:[#allocation10] sm:$0xff]
    %v1886 = vld [vmem:[#allocation10 + $0x8] sm:$0xff]
    %v1887 = vld [vmem:[#allocation10 + $0x10] sm:$0xff]
    %v1888 = vld [vmem:[#allocation10 + $0x18] sm:$0xff]
    %v1889 = vld [vmem:[#allocation10 + $0x20] sm:$0xff]
    %v1890 = vld [vmem:[#allocation10 + $0x28] sm:$0xff]
    %v1891 = vld [vmem:[#allocation10 + $0x30] sm:$0xff]
    %v1892 = vld [vmem:[#allocation10 + $0x38] sm:$0xff]
    %v1893 = vld [vmem:[%s8] sm:$0x1]
    %v1895 = vlaneseq
    %v1896 = vshrl.u32 %v1895, 7
    %v1897 = vsub.s32 0, %v1896
    %v1898 = vrot.slane %v1893, %v1897
    %vm1900 = vcmask 523264
    %v1902 = vsel %vm1900, %v1877, 0
    %v1905 = vsel %vm1900, %v1878, 0
    %v1908 = vsel %vm1900, %v1879, 0
    %v1911 = vsel %vm1900, %v1880, 0
    %v1914 = vsel %vm1900, %v1881, 0
    %v1917 = vsel %vm1900, %v1882, 0
    %v1920 = vsel %vm1900, %v1883, 0
    %v1923 = vsel %vm1900, %v1884, 0
    %1925 = vmatprep.subr.mxu0 0.0
    %1926 = vmatpush1.msra.mxu0 %v1885
    %1927 = vmatprep.subr.mxu0 0.0
    %1928 = vmatpush1.msra.mxu0 %v1886
    %1929 = vmatprep.subr.mxu0 0.0
    %1930 = vmatpush1.msra.mxu0 %v1887
    %1931 = vmatprep.subr.mxu0 0.0
    %1932 = vmatpush1.msra.mxu0 %v1888
    %1933 = vmatprep.subr.mxu0 0.0
    %1934 = vmatpush1.msra.mxu0 %v1889
    %1935 = vmatprep.subr.mxu0 0.0
    %1936 = vmatpush1.msra.mxu0 %v1890
    %1937 = vmatprep.subr.mxu0 0.0
    %1938 = vmatpush1.msra.mxu0 %v1891
    %1939 = vmatprep.subr.mxu0 0.0
    %1940 = vmatpush1.msra.mxu0 %v1892
    %1941 = vmatprep.subr.mxu0 0.0
    %1942 = vmatpush1.msra.mxu0 0.0
    %1943 = vmatprep.subr.mxu0 0.0
    %1944 = vmatpush1.msra.mxu0 0.0
    %1945 = vmatprep.subr.mxu0 0.0
    %1946 = vmatpush1.msra.mxu0 0.0
    %1947 = vmatprep.subr.mxu0 0.0
    %1948 = vmatpush1.msra.mxu0 0.0
    %1949 = vmatprep.subr.mxu0 0.0
    %1950 = vmatpush1.msra.mxu0 0.0
    %1951 = vmatprep.subr.mxu0 0.0
    %1952 = vmatpush1.msra.mxu0 0.0
    %1953 = vmatprep.subr.mxu0 0.0
    %1954 = vmatpush1.msra.mxu0 0.0
    %1955 = vmatprep.subr.mxu0 0.0
    %1956 = vmatpush1.msra.mxu0 0.0
    %1957 = vmatprep.subr.mxu0 0.0
    %1958 = vmatpush1.msra.mxu0 0.0
    %1959 = vmatprep.subr.mxu0 0.0
    %1960 = vmatpush1.msra.mxu0 0.0
    %1961 = vmatprep.subr.mxu0 0.0
    %1962 = vmatpush1.msra.mxu0 0.0
    %1963 = vmatprep.subr.mxu0 0.0
    %1964 = vmatpush1.msra.mxu0 0.0
    %1965 = vmatprep.subr.mxu0 0.0
    %1966 = vmatpush1.msra.mxu0 0.0
    %1967 = vmatprep.subr.mxu0 0.0
    %1968 = vmatpush1.msra.mxu0 0.0
    %1969 = vmatprep.subr.mxu0 0.0
    %1970 = vmatpush1.msra.mxu0 0.0
    %1971 = vmatprep.subr.mxu0 0.0
    %1972 = vmatpush1.msra.mxu0 0.0
    %1973 = vmatprep.subr.mxu0 0.0
    %1974 = vmatpush1.msra.mxu0 0.0
    %1975 = vmatprep.subr.mxu0 0.0
    %1976 = vmatpush1.msra.mxu0 0.0
    %1977 = vmatprep.subr.mxu0 0.0
    %1978 = vmatpush1.msra.mxu0 0.0
    %1979 = vmatprep.subr.mxu0 0.0
    %1980 = vmatpush1.msra.mxu0 0.0
    %1981 = vmatprep.subr.mxu0 0.0
    %1982 = vmatpush1.msra.mxu0 0.0
    %1983 = vmatprep.subr.mxu0 0.0
    %1984 = vmatpush1.msra.mxu0 0.0
    %1985 = vmatprep.subr.mxu0 0.0
    %1986 = vmatpush1.msra.mxu0 0.0
    %1987 = vmatprep.subr.mxu0 0.0
    %1988 = vmatpush1.msra.mxu0 0.0
    %1989 = vmatprep.mubr.f32.mxu0 0.0
    %1990 = vmatmul.mubr.f32.gmra.mrb[0].mxu0 %v1902
    %v1991 = vpop.f32.mrb[0].mxu0
    %v1992 = vadd.f32 %v1898, %v1991
    %v1993 = vpop.f32.mrb[0].mxu0
    %1994 = vmatprep.mubr.f32.mxu0 0.0
    %1995 = vmatmul.mubr.f32.gmra.mrb[0].mxu0 %v1905
    %v1996 = vpop.f32.mrb[0].mxu0
    %v1997 = vadd.f32 %v1898, %v1996
    %v1998 = vpop.f32.mrb[0].mxu0
    %1999 = vmatprep.mubr.f32.mxu0 0.0
    %2000 = vmatmul.mubr.f32.gmra.mrb[0].mxu0 %v1908
    %v2001 = vpop.f32.mrb[0].mxu0
    %v2002 = vadd.f32 %v1898, %v2001
    %v2003 = vpop.f32.mrb[0].mxu0
    %2004 = vmatprep.mubr.f32.mxu0 0.0
    %2005 = vmatmul.mubr.f32.gmra.mrb[0].mxu0 %v1911
    %v2006 = vpop.f32.mrb[0].mxu0
    %v2007 = vadd.f32 %v1898, %v2006
    %v2008 = vpop.f32.mrb[0].mxu0
    %2009 = vmatprep.mubr.f32.mxu0 0.0
    %2010 = vmatmul.mubr.f32.gmra.mrb[0].mxu0 %v1914
    %v2011 = vpop.f32.mrb[0].mxu0
    %v2012 = vadd.f32 %v1898, %v2011
    %v2013 = vpop.f32.mrb[0].mxu0
    %2014 = vmatprep.mubr.f32.mxu0 0.0
    %2015 = vmatmul.mubr.f32.gmra.mrb[0].mxu0 %v1917
    %v2016 = vpop.f32.mrb[0].mxu0
    %v2017 = vadd.f32 %v1898, %v2016
    %v2018 = vpop.f32.mrb[0].mxu0
    %2019 = vmatprep.mubr.f32.mxu0 0.0
    %2020 = vmatmul.mubr.f32.gmra.mrb[0].mxu0 %v1920
    %v2021 = vpop.f32.mrb[0].mxu0
    %v2022 = vadd.f32 %v1898, %v2021
    %v2023 = vpop.f32.mrb[0].mxu0
    %2024 = vmatprep.mubr.f32.mxu0 0.0
    %2025 = vmatmul.mubr.f32.gmra.mrb[0].mxu0 %v1923
    %v2026 = vpop.f32.mrb[0].mxu0
    %v2027 = vadd.f32 %v1898, %v2026
    %v2028 = vpop.f32.mrb[0].mxu0
    %2029 = vdwg.mxu0
    %2030 = vst [vmem:[#allocation12] sm:$0xff] %v1992
    %2031 = vst [vmem:[#allocation12 + $0x8] sm:$0xff] %v1997
    %2032 = vst [vmem:[#allocation12 + $0x10] sm:$0xff] %v2002
    %2033 = vst [vmem:[#allocation12 + $0x18] sm:$0xff] %v2007
    %2034 = vst [vmem:[#allocation12 + $0x20] sm:$0xff] %v2012
    %2035 = vst [vmem:[#allocation12 + $0x28] sm:$0xff] %v2017
    %2036 = vst [vmem:[#allocation12 + $0x30] sm:$0xff] %v2022
    %2037 = vst [vmem:[#allocation12 + $0x38] sm:$0xff] %v2027
    // Predicated region
    $region54: #{tpu_custom_call.1} parent=1 // pred_check
      _
    $region55: #{tpu_custom_call.1} parent=1 // pred_check_branch
      %2039 = sbr.rel (0) target = $region57
    $region56: #{tpu_custom_call.1} parent=1 // pred_region
      %s2041 = ssub.s32 1024, 1024
      %2042 = vsyncadd [#allocation6], %s2041
      %s2043 = sshll.u32 [#allocation12], 4
      %s2044 = int_to_ptr.vmem [resolvable:$true] %s2043
      %2049 = dma.vmem_to_hbm [thread:$0]  %s2044, 1024, %s9, [#allocation6], 128, 128, 8
    $region57: #{tpu_custom_call.1} parent=1 // pred_fallthru
      _
    // Predicated region
    $region58: #{tpu_custom_call.1} parent=1 // pred_check
      _
    $region59: #{tpu_custom_call.1} parent=1 // pred_check_branch
      %2051 = sbr.rel (0) target = $region61
    $region60: #{tpu_custom_call.1} parent=1 // pred_region
      %2052 = dma.done [#allocation6], 1024
    $region61: #{tpu_custom_call.1} parent=1 // pred_fallthru
      _
    %2053 = vsyncpa [#allocation5], 1
    %2054 = vsyncpa [#allocation8], 1
    %2055 = vsyncpa [#allocation11], 1
    %2056 = vsyncpa [#allocation6], 1

</llo_original>
